<compile_context>
chip_gen: v5e
topology: v5e:2x2
jax: 0.10.0
libtpu: 0.0.40
codegen_flags: <defaults>
</compile_context>

<pallas_src>
import functools

import jax
import jax.numpy as jnp
from jax.experimental import pallas as pl
from jax.experimental.pallas import tpu as pltpu


_LANE = 128
_ISSUE_UNROLL = 8     # row-gather DMAs issued per inner-loop iteration
_COMPUTE_CHUNK = 64   # rows per multiply+reduce chunk (keeps live vregs ~24)


def _mf_kernel(uid_ref, iid_ref, u_hbm, i_hbm, o_ref, ubuf, ibuf, sem, *,
               n_inner):
    # uid_ref / iid_ref : (b_pad,) int32 ids in SMEM (scalar prefetch).
    # u_hbm / i_hbm     : full lane-padded factor tables, left in HBM (pl.ANY).
    # o_ref             : (1, TB) lane-dense output block (VMEM).
    # ubuf / ibuf       : (2, TB, Fp) VMEM double-buffered gather buffers.
    # sem               : (2, 2) DMA semaphores, indexed [table, slot].
    tb = ubuf.shape[1]
    o = pl.program_id(0)           # "parallel" axis (megacore split on v7x)
    i = pl.program_id(1)           # "arbitrary" axis (sequential per core)
    tile = o * n_inner + i         # global batch-tile index
    slot = i % 2                   # double-buffer slot for this tile

    def issue(tile_idx, dst_slot):
        base = tile_idx * tb
        @pl.loop(0, tb // _ISSUE_UNROLL)
        def _issue(j):
            r0 = pl.multiple_of(j * _ISSUE_UNROLL, _ISSUE_UNROLL)
            # Manual unroll: lets SMEM id loads, address math and DMA
            # descriptor pushes co-issue across bundle slots.
            for u in range(_ISSUE_UNROLL):
                r = r0 + u
                uid = uid_ref[base + r]
                iid = iid_ref[base + r]
                pltpu.make_async_copy(
                    u_hbm.at[pl.ds(uid, 1), :],
                    ubuf.at[dst_slot, pl.ds(r, 1), :],
                    sem.at[0, dst_slot]).start()
                pltpu.make_async_copy(
                    i_hbm.at[pl.ds(iid, 1), :],
                    ibuf.at[dst_slot, pl.ds(r, 1), :],
                    sem.at[1, dst_slot]).start()

    # First tile handled by this core: nothing in flight yet -> prime slot 0.
    @pl.when(i == 0)
    def _prime():
        issue(tile, 0)

    # Prefetch next tile into the other slot *before* waiting on this one so
    # its HBM latency overlaps this tile's wait + compute.
    @pl.when(i + 1 < n_inner)
    def _prefetch():
        issue(tile + 1, 1 - slot)

    # One wait per table: DMA semaphores count bytes, so a single descriptor
    # sized to the whole slot buffer retires all TB row copies at once.
    pltpu.make_async_copy(ubuf.at[slot], ubuf.at[slot], sem.at[0, slot]).wait()
    pltpu.make_async_copy(ibuf.at[slot], ibuf.at[slot], sem.at[1, slot]).wait()

    # VPU elementwise multiply + XLU lane reduce over the factor dim,
    # chunked so operands never exceed a handful of vregs. Zero-padded lanes
    # contribute nothing to the sum.
    for c in range(tb // _COMPUTE_CHUNK):
        r0 = c * _COMPUTE_CHUNK
        u_rows = ubuf[slot, pl.ds(r0, _COMPUTE_CHUNK), :]
        i_rows = ibuf[slot, pl.ds(r0, _COMPUTE_CHUNK), :]
        vals = jnp.sum(u_rows * i_rows, axis=1).reshape(1, _COMPUTE_CHUNK)
        o_ref[:, pl.ds(r0, _COMPUTE_CHUNK)] = vals


def pad_factors(w):
    """Lane-pad the factor dim to a multiple of 128 and cast to f32.

    Call this ONCE when the factor tables are created/updated, not per
    forward call: per-call padding streams both full tables through HBM as a
    separate XLA op before the kernel even runs.
    """
    _, f = w.shape
    f_pad = max(_LANE, ((f + _LANE - 1) // _LANE) * _LANE)
    return jnp.pad(w.astype(jnp.float32), ((0, 0), (0, f_pad - f)))


def matrix_factorization_forward(data, user_w, item_w, *, tile_b=512):
    """data: (B, 2) int indices; user_w/item_w: (n_users/n_items, F) tables.

    Tables should be pre-padded with pad_factors(); padding here is only a
    fallback so raw tables still work.
    """
    B = data.shape[0]
    if user_w.dtype != jnp.float32 or user_w.shape[1] % _LANE != 0:
        user_w = pad_factors(user_w)
    if item_w.dtype != jnp.float32 or item_w.shape[1] % _LANE != 0:
        item_w = pad_factors(item_w)
    assert user_w.shape[1] == item_w.shape[1]
    f_pad = user_w.shape[1]

    # Batch tile: multiple of 128 (lane-dense output block), clamped down for
    # tiny batches so we don't gather hundreds of padding rows.
    tile_b = max(_LANE, (tile_b // _LANE) * _LANE)
    tile_b = min(tile_b, max(_LANE, ((B + _LANE - 1) // _LANE) * _LANE))
    assert tile_b % _ISSUE_UNROLL == 0 and tile_b % _COMPUTE_CHUNK == 0

    num_tiles = pl.cdiv(B, tile_b)
    # Outer "parallel" axis (v7x megacore), inner "arbitrary" axis carrying
    # the per-core double-buffer state (each core primes at inner == 0).
    n_outer = 2 if num_tiles >= 2 else 1
    n_inner = pl.cdiv(num_tiles, n_outer)
    b_pad = n_outer * n_inner * tile_b

    # Pad ids with 0 (always a valid row); padded results are sliced off.
    uids = jnp.pad(data[:, 0].astype(jnp.int32), (0, b_pad - B))
    iids = jnp.pad(data[:, 1].astype(jnp.int32), (0, b_pad - B))

    kernel = functools.partial(_mf_kernel, n_inner=n_inner)
    out = pl.pallas_call(
        kernel,
        out_shape=jax.ShapeDtypeStruct((1, b_pad), jnp.float32),
        grid_spec=pltpu.PrefetchScalarGridSpec(
            num_scalar_prefetch=2,                   # uids, iids -> SMEM
            grid=(n_outer, n_inner),
            in_specs=[
                pl.BlockSpec(memory_space=pl.ANY),   # user table stays in HBM
                pl.BlockSpec(memory_space=pl.ANY),   # item table stays in HBM
            ],
            out_specs=pl.BlockSpec(
                (1, tile_b), lambda o, i, uid, iid: (0, o * n_inner + i)),
            scratch_shapes=[
                pltpu.VMEM((2, tile_b, f_pad), jnp.float32),   # user rows
                pltpu.VMEM((2, tile_b, f_pad), jnp.float32),   # item rows
                pltpu.SemaphoreType.DMA((2, 2)),               # [table, slot]
            ],
        ),
        compiler_params=pltpu.CompilerParams(
            dimension_semantics=("parallel", "arbitrary")),
    )(uids, iids, user_w, item_w)

    return out.reshape(-1)[:B]  # (B,)


if __name__ == "__main__":
    # Small, deterministic setup consistent with the module.
    n_users, n_items, n_factors = 32, 48, 20
    batch = 8

    key = jax.random.PRNGKey(0)
    k_u, k_i, k_du, k_di = jax.random.split(key, 4)

    # Embedding.weight.data.uniform_(0, 0.05)
    user_w = jax.random.uniform(
        k_u, (n_users, n_factors), dtype=jnp.float32, minval=0.0, maxval=0.05)
    item_w = jax.random.uniform(
        k_i, (n_items, n_factors), dtype=jnp.float32, minval=0.0, maxval=0.05)

    # data: (B, 2) int32, column 0 = user ids, column 1 = item ids
    users = jax.random.randint(k_du, (batch,), 0, n_users, dtype=jnp.int32)
    items = jax.random.randint(k_di, (batch,), 0, n_items, dtype=jnp.int32)
    data = jnp.stack([users, items], axis=1)

    # Pad/cast the factor tables ONCE (as would be done at module init).
    user_wp = pad_factors(user_w)
    item_wp = pad_factors(item_w)

    out = matrix_factorization_forward(data, user_wp, item_wp)
    out = jax.block_until_ready(out)

    # Pure-JAX reference of the PyTorch forward semantics.
    ref = jnp.sum(user_w[data[:, 0]] * item_w[data[:, 1]], axis=1)
    assert out.shape == (batch,)
    assert out.dtype == jnp.float32
    assert jnp.allclose(out, ref, rtol=1e-6, atol=1e-6)

    print("KERNEL_OK")
</pallas_src>

<mosaic_0001>
module attributes {stable_mosaic.version = 11 : i64} {
  func.func @_mf_kernel(%arg0: i32, %arg1: i32, %arg2: memref<128xi32, #tpu.memory_space<smem>>, %arg3: memref<128xi32, #tpu.memory_space<smem>>, %arg4: memref<32x128xf32, #tpu.memory_space<any>>, %arg5: memref<48x128xf32, #tpu.memory_space<any>>, %arg6: memref<1x128xf32, #tpu.memory_space<vmem>>, %arg7: memref<2x128x128xf32, #tpu.memory_space<vmem>>, %arg8: memref<2x128x128xf32, #tpu.memory_space<vmem>>, %arg9: memref<2x2x!tpu.dma_semaphore, #tpu.memory_space<semaphore_mem>>) attributes {dimension_semantics = [#tpu.dimension_semantics<parallel>, #tpu.dimension_semantics<arbitrary>], iteration_bounds = array<i64: 1, 1>, scalar_prefetch = 2 : i64, scratch_operands = 3 : i64, tpu.core_type = #tpu.core_type<tc>, window_params = [{}, {}, {transform_indices = @transform_2, window_bounds = array<i64: 1, 128>}]} {
    %c1_i32 = arith.constant 1 : i32
    %0 = arith.muli %arg0, %c1_i32 : i32
    %1 = arith.addi %0, %arg1 : i32
    %c2_i32 = arith.constant 2 : i32
    %c0_i32 = arith.constant 0 : i32
    %2 = arith.cmpi eq, %c2_i32, %c0_i32 : i32
    %c1_i32_0 = arith.constant 1 : i32
    %3 = arith.select %2, %c1_i32_0, %c2_i32 : i32
    %4 = arith.remsi %arg1, %3 : i32
    %c0_i32_1 = arith.constant 0 : i32
    %5 = arith.cmpi ne, %4, %c0_i32_1 : i32
    %c0_i32_2 = arith.constant 0 : i32
    %6 = arith.cmpi slt, %4, %c0_i32_2 : i32
    %c0_i32_3 = arith.constant 0 : i32
    %7 = arith.cmpi slt, %3, %c0_i32_3 : i32
    %8 = arith.xori %6, %7 : i1
    %9 = arith.andi %8, %5 : i1
    %10 = arith.addi %4, %3 : i32
    %11 = arith.select %9, %10, %4 : i32
    %c0_i32_4 = arith.constant 0 : i32
    %12 = arith.cmpi eq, %arg1, %c0_i32_4 : i32
    %13 = arith.extui %12 : i1 to i32
    %c0_i32_5 = arith.constant 0 : i32
    %14 = arith.cmpi ne, %13, %c0_i32_5 : i32
    scf.if %14 {
      %c128_i32 = arith.constant 128 : i32
      %51 = arith.muli %1, %c128_i32 : i32
      %c0_i32_30 = arith.constant 0 : i32
      %c16_i32 = arith.constant 16 : i32
      %52 = arith.addi %c0_i32_30, %c16_i32 : i32
      %c1_i32_31 = arith.constant 1 : i32
      scf.for %arg10 = %c0_i32_30 to %52 step %c1_i32_31  : i32 {
        %c1_i32_33 = arith.constant 1 : i32
        %53 = arith.muli %arg10, %c1_i32_33 : i32
        %c0_i32_34 = arith.constant 0 : i32
        %54 = arith.addi %c0_i32_34, %53 : i32
        %c8_i32 = arith.constant 8 : i32
        %55 = arith.muli %54, %c8_i32 : i32
        %56 = tpu.assume_multiple %55, 8 : i32
        %c0_i32_35 = arith.constant 0 : i32
        %57 = arith.addi %56, %c0_i32_35 : i32
        %58 = arith.addi %51, %57 : i32
        %59 = arith.index_cast %58 : i32 to index
        %60 = memref.load %arg2[%59] : memref<128xi32, #tpu.memory_space<smem>>
        %61 = arith.addi %51, %57 : i32
        %62 = arith.index_cast %61 : i32 to index
        %63 = memref.load %arg3[%62] : memref<128xi32, #tpu.memory_space<smem>>
        %c0_i32_36 = arith.constant 0 : i32
        %c0_i32_37 = arith.constant 0 : i32
        %c0_i32_38 = arith.constant 0 : i32
        %c0_i32_39 = arith.constant 0 : i32
        %64 = tpu.memref_slice %arg4[%60, %c0_i32_39] : memref<32x128xf32, #tpu.memory_space<any>> -> memref<1x128xf32, #tpu.memory_space<any>>
        %c0_i32_40 = arith.constant 0 : i32
        %65 = tpu.memref_slice %arg7[%c0_i32_36, %57, %c0_i32_40] : memref<2x128x128xf32, #tpu.memory_space<vmem>> -> memref<1x1x128xf32, #tpu.memory_space<vmem>>
        %66 = tpu.memref_squeeze %65 : memref<1x1x128xf32, #tpu.memory_space<vmem>> -> memref<1x128xf32, #tpu.memory_space<vmem>>
        %67 = tpu.memref_slice %arg9[%c0_i32_37, %c0_i32_38] : memref<2x2x!tpu.dma_semaphore, #tpu.memory_space<semaphore_mem>> -> memref<1x1x!tpu.dma_semaphore, #tpu.memory_space<semaphore_mem>>
        %68 = tpu.memref_squeeze %67 : memref<1x1x!tpu.dma_semaphore, #tpu.memory_space<semaphore_mem>> -> memref<!tpu.dma_semaphore, #tpu.memory_space<semaphore_mem>>
        tpu.enqueue_dma source(%64 : memref<1x128xf32, #tpu.memory_space<any>>) target(%66 : memref<1x128xf32, #tpu.memory_space<vmem>>) target_semaphore(%68 : memref<!tpu.dma_semaphore, #tpu.memory_space<semaphore_mem>>)
        %c0_i32_41 = arith.constant 0 : i32
        %c1_i32_42 = arith.constant 1 : i32
        %c0_i32_43 = arith.constant 0 : i32
        %c0_i32_44 = arith.constant 0 : i32
        %69 = tpu.memref_slice %arg5[%63, %c0_i32_44] : memref<48x128xf32, #tpu.memory_space<any>> -> memref<1x128xf32, #tpu.memory_space<any>>
        %c0_i32_45 = arith.constant 0 : i32
        %70 = tpu.memref_slice %arg8[%c0_i32_41, %57, %c0_i32_45] : memref<2x128x128xf32, #tpu.memory_space<vmem>> -> memref<1x1x128xf32, #tpu.memory_space<vmem>>
        %71 = tpu.memref_squeeze %70 : memref<1x1x128xf32, #tpu.memory_space<vmem>> -> memref<1x128xf32, #tpu.memory_space<vmem>>
        %72 = tpu.memref_slice %arg9[%c1_i32_42, %c0_i32_43] : memref<2x2x!tpu.dma_semaphore, #tpu.memory_space<semaphore_mem>> -> memref<1x1x!tpu.dma_semaphore, #tpu.memory_space<semaphore_mem>>
        %73 = tpu.memref_squeeze %72 : memref<1x1x!tpu.dma_semaphore, #tpu.memory_space<semaphore_mem>> -> memref<!tpu.dma_semaphore, #tpu.memory_space<semaphore_mem>>
        tpu.enqueue_dma source(%69 : memref<1x128xf32, #tpu.memory_space<any>>) target(%71 : memref<1x128xf32, #tpu.memory_space<vmem>>) target_semaphore(%73 : memref<!tpu.dma_semaphore, #tpu.memory_space<semaphore_mem>>)
        %c1_i32_46 = arith.constant 1 : i32
        %74 = arith.addi %56, %c1_i32_46 : i32
        %75 = arith.addi %51, %74 : i32
        %76 = arith.index_cast %75 : i32 to index
        %77 = memref.load %arg2[%76] : memref<128xi32, #tpu.memory_space<smem>>
        %78 = arith.addi %51, %74 : i32
        %79 = arith.index_cast %78 : i32 to index
        %80 = memref.load %arg3[%79] : memref<128xi32, #tpu.memory_space<smem>>
        %c0_i32_47 = arith.constant 0 : i32
        %c0_i32_48 = arith.constant 0 : i32
        %c0_i32_49 = arith.constant 0 : i32
        %c0_i32_50 = arith.constant 0 : i32
        %81 = tpu.memref_slice %arg4[%77, %c0_i32_50] : memref<32x128xf32, #tpu.memory_space<any>> -> memref<1x128xf32, #tpu.memory_space<any>>
        %c0_i32_51 = arith.constant 0 : i32
        %82 = tpu.memref_slice %arg7[%c0_i32_47, %74, %c0_i32_51] : memref<2x128x128xf32, #tpu.memory_space<vmem>> -> memref<1x1x128xf32, #tpu.memory_space<vmem>>
        %83 = tpu.memref_squeeze %82 : memref<1x1x128xf32, #tpu.memory_space<vmem>> -> memref<1x128xf32, #tpu.memory_space<vmem>>
        %84 = tpu.memref_slice %arg9[%c0_i32_48, %c0_i32_49] : memref<2x2x!tpu.dma_semaphore, #tpu.memory_space<semaphore_mem>> -> memref<1x1x!tpu.dma_semaphore, #tpu.memory_space<semaphore_mem>>
        %85 = tpu.memref_squeeze %84 : memref<1x1x!tpu.dma_semaphore, #tpu.memory_space<semaphore_mem>> -> memref<!tpu.dma_semaphore, #tpu.memory_space<semaphore_mem>>
        tpu.enqueue_dma source(%81 : memref<1x128xf32, #tpu.memory_space<any>>) target(%83 : memref<1x128xf32, #tpu.memory_space<vmem>>) target_semaphore(%85 : memref<!tpu.dma_semaphore, #tpu.memory_space<semaphore_mem>>)
        %c0_i32_52 = arith.constant 0 : i32
        %c1_i32_53 = arith.constant 1 : i32
        %c0_i32_54 = arith.constant 0 : i32
        %c0_i32_55 = arith.constant 0 : i32
        %86 = tpu.memref_slice %arg5[%80, %c0_i32_55] : memref<48x128xf32, #tpu.memory_space<any>> -> memref<1x128xf32, #tpu.memory_space<any>>
        %c0_i32_56 = arith.constant 0 : i32
        %87 = tpu.memref_slice %arg8[%c0_i32_52, %74, %c0_i32_56] : memref<2x128x128xf32, #tpu.memory_space<vmem>> -> memref<1x1x128xf32, #tpu.memory_space<vmem>>
        %88 = tpu.memref_squeeze %87 : memref<1x1x128xf32, #tpu.memory_space<vmem>> -> memref<1x128xf32, #tpu.memory_space<vmem>>
        %89 = tpu.memref_slice %arg9[%c1_i32_53, %c0_i32_54] : memref<2x2x!tpu.dma_semaphore, #tpu.memory_space<semaphore_mem>> -> memref<1x1x!tpu.dma_semaphore, #tpu.memory_space<semaphore_mem>>
        %90 = tpu.memref_squeeze %89 : memref<1x1x!tpu.dma_semaphore, #tpu.memory_space<semaphore_mem>> -> memref<!tpu.dma_semaphore, #tpu.memory_space<semaphore_mem>>
        tpu.enqueue_dma source(%86 : memref<1x128xf32, #tpu.memory_space<any>>) target(%88 : memref<1x128xf32, #tpu.memory_space<vmem>>) target_semaphore(%90 : memref<!tpu.dma_semaphore, #tpu.memory_space<semaphore_mem>>)
        %c2_i32_57 = arith.constant 2 : i32
        %91 = arith.addi %56, %c2_i32_57 : i32
        %92 = arith.addi %51, %91 : i32
        %93 = arith.index_cast %92 : i32 to index
        %94 = memref.load %arg2[%93] : memref<128xi32, #tpu.memory_space<smem>>
        %95 = arith.addi %51, %91 : i32
        %96 = arith.index_cast %95 : i32 to index
        %97 = memref.load %arg3[%96] : memref<128xi32, #tpu.memory_space<smem>>
        %c0_i32_58 = arith.constant 0 : i32
        %c0_i32_59 = arith.constant 0 : i32
        %c0_i32_60 = arith.constant 0 : i32
        %c0_i32_61 = arith.constant 0 : i32
        %98 = tpu.memref_slice %arg4[%94, %c0_i32_61] : memref<32x128xf32, #tpu.memory_space<any>> -> memref<1x128xf32, #tpu.memory_space<any>>
        %c0_i32_62 = arith.constant 0 : i32
        %99 = tpu.memref_slice %arg7[%c0_i32_58, %91, %c0_i32_62] : memref<2x128x128xf32, #tpu.memory_space<vmem>> -> memref<1x1x128xf32, #tpu.memory_space<vmem>>
        %100 = tpu.memref_squeeze %99 : memref<1x1x128xf32, #tpu.memory_space<vmem>> -> memref<1x128xf32, #tpu.memory_space<vmem>>
        %101 = tpu.memref_slice %arg9[%c0_i32_59, %c0_i32_60] : memref<2x2x!tpu.dma_semaphore, #tpu.memory_space<semaphore_mem>> -> memref<1x1x!tpu.dma_semaphore, #tpu.memory_space<semaphore_mem>>
        %102 = tpu.memref_squeeze %101 : memref<1x1x!tpu.dma_semaphore, #tpu.memory_space<semaphore_mem>> -> memref<!tpu.dma_semaphore, #tpu.memory_space<semaphore_mem>>
        tpu.enqueue_dma source(%98 : memref<1x128xf32, #tpu.memory_space<any>>) target(%100 : memref<1x128xf32, #tpu.memory_space<vmem>>) target_semaphore(%102 : memref<!tpu.dma_semaphore, #tpu.memory_space<semaphore_mem>>)
        %c0_i32_63 = arith.constant 0 : i32
        %c1_i32_64 = arith.constant 1 : i32
        %c0_i32_65 = arith.constant 0 : i32
        %c0_i32_66 = arith.constant 0 : i32
        %103 = tpu.memref_slice %arg5[%97, %c0_i32_66] : memref<48x128xf32, #tpu.memory_space<any>> -> memref<1x128xf32, #tpu.memory_space<any>>
        %c0_i32_67 = arith.constant 0 : i32
        %104 = tpu.memref_slice %arg8[%c0_i32_63, %91, %c0_i32_67] : memref<2x128x128xf32, #tpu.memory_space<vmem>> -> memref<1x1x128xf32, #tpu.memory_space<vmem>>
        %105 = tpu.memref_squeeze %104 : memref<1x1x128xf32, #tpu.memory_space<vmem>> -> memref<1x128xf32, #tpu.memory_space<vmem>>
        %106 = tpu.memref_slice %arg9[%c1_i32_64, %c0_i32_65] : memref<2x2x!tpu.dma_semaphore, #tpu.memory_space<semaphore_mem>> -> memref<1x1x!tpu.dma_semaphore, #tpu.memory_space<semaphore_mem>>
        %107 = tpu.memref_squeeze %106 : memref<1x1x!tpu.dma_semaphore, #tpu.memory_space<semaphore_mem>> -> memref<!tpu.dma_semaphore, #tpu.memory_space<semaphore_mem>>
        tpu.enqueue_dma source(%103 : memref<1x128xf32, #tpu.memory_space<any>>) target(%105 : memref<1x128xf32, #tpu.memory_space<vmem>>) target_semaphore(%107 : memref<!tpu.dma_semaphore, #tpu.memory_space<semaphore_mem>>)
        %c3_i32 = arith.constant 3 : i32
        %108 = arith.addi %56, %c3_i32 : i32
        %109 = arith.addi %51, %108 : i32
        %110 = arith.index_cast %109 : i32 to index
        %111 = memref.load %arg2[%110] : memref<128xi32, #tpu.memory_space<smem>>
        %112 = arith.addi %51, %108 : i32
        %113 = arith.index_cast %112 : i32 to index
        %114 = memref.load %arg3[%113] : memref<128xi32, #tpu.memory_space<smem>>
        %c0_i32_68 = arith.constant 0 : i32
        %c0_i32_69 = arith.constant 0 : i32
        %c0_i32_70 = arith.constant 0 : i32
        %c0_i32_71 = arith.constant 0 : i32
        %115 = tpu.memref_slice %arg4[%111, %c0_i32_71] : memref<32x128xf32, #tpu.memory_space<any>> -> memref<1x128xf32, #tpu.memory_space<any>>
        %c0_i32_72 = arith.constant 0 : i32
        %116 = tpu.memref_slice %arg7[%c0_i32_68, %108, %c0_i32_72] : memref<2x128x128xf32, #tpu.memory_space<vmem>> -> memref<1x1x128xf32, #tpu.memory_space<vmem>>
        %117 = tpu.memref_squeeze %116 : memref<1x1x128xf32, #tpu.memory_space<vmem>> -> memref<1x128xf32, #tpu.memory_space<vmem>>
        %118 = tpu.memref_slice %arg9[%c0_i32_69, %c0_i32_70] : memref<2x2x!tpu.dma_semaphore, #tpu.memory_space<semaphore_mem>> -> memref<1x1x!tpu.dma_semaphore, #tpu.memory_space<semaphore_mem>>
        %119 = tpu.memref_squeeze %118 : memref<1x1x!tpu.dma_semaphore, #tpu.memory_space<semaphore_mem>> -> memref<!tpu.dma_semaphore, #tpu.memory_space<semaphore_mem>>
        tpu.enqueue_dma source(%115 : memref<1x128xf32, #tpu.memory_space<any>>) target(%117 : memref<1x128xf32, #tpu.memory_space<vmem>>) target_semaphore(%119 : memref<!tpu.dma_semaphore, #tpu.memory_space<semaphore_mem>>)
        %c0_i32_73 = arith.constant 0 : i32
        %c1_i32_74 = arith.constant 1 : i32
        %c0_i32_75 = arith.constant 0 : i32
        %c0_i32_76 = arith.constant 0 : i32
        %120 = tpu.memref_slice %arg5[%114, %c0_i32_76] : memref<48x128xf32, #tpu.memory_space<any>> -> memref<1x128xf32, #tpu.memory_space<any>>
        %c0_i32_77 = arith.constant 0 : i32
        %121 = tpu.memref_slice %arg8[%c0_i32_73, %108, %c0_i32_77] : memref<2x128x128xf32, #tpu.memory_space<vmem>> -> memref<1x1x128xf32, #tpu.memory_space<vmem>>
        %122 = tpu.memref_squeeze %121 : memref<1x1x128xf32, #tpu.memory_space<vmem>> -> memref<1x128xf32, #tpu.memory_space<vmem>>
        %123 = tpu.memref_slice %arg9[%c1_i32_74, %c0_i32_75] : memref<2x2x!tpu.dma_semaphore, #tpu.memory_space<semaphore_mem>> -> memref<1x1x!tpu.dma_semaphore, #tpu.memory_space<semaphore_mem>>
        %124 = tpu.memref_squeeze %123 : memref<1x1x!tpu.dma_semaphore, #tpu.memory_space<semaphore_mem>> -> memref<!tpu.dma_semaphore, #tpu.memory_space<semaphore_mem>>
        tpu.enqueue_dma source(%120 : memref<1x128xf32, #tpu.memory_space<any>>) target(%122 : memref<1x128xf32, #tpu.memory_space<vmem>>) target_semaphore(%124 : memref<!tpu.dma_semaphore, #tpu.memory_space<semaphore_mem>>)
        %c4_i32 = arith.constant 4 : i32
        %125 = arith.addi %56, %c4_i32 : i32
        %126 = arith.addi %51, %125 : i32
        %127 = arith.index_cast %126 : i32 to index
        %128 = memref.load %arg2[%127] : memref<128xi32, #tpu.memory_space<smem>>
        %129 = arith.addi %51, %125 : i32
        %130 = arith.index_cast %129 : i32 to index
        %131 = memref.load %arg3[%130] : memref<128xi32, #tpu.memory_space<smem>>
        %c0_i32_78 = arith.constant 0 : i32
        %c0_i32_79 = arith.constant 0 : i32
        %c0_i32_80 = arith.constant 0 : i32
        %c0_i32_81 = arith.constant 0 : i32
        %132 = tpu.memref_slice %arg4[%128, %c0_i32_81] : memref<32x128xf32, #tpu.memory_space<any>> -> memref<1x128xf32, #tpu.memory_space<any>>
        %c0_i32_82 = arith.constant 0 : i32
        %133 = tpu.memref_slice %arg7[%c0_i32_78, %125, %c0_i32_82] : memref<2x128x128xf32, #tpu.memory_space<vmem>> -> memref<1x1x128xf32, #tpu.memory_space<vmem>>
        %134 = tpu.memref_squeeze %133 : memref<1x1x128xf32, #tpu.memory_space<vmem>> -> memref<1x128xf32, #tpu.memory_space<vmem>>
        %135 = tpu.memref_slice %arg9[%c0_i32_79, %c0_i32_80] : memref<2x2x!tpu.dma_semaphore, #tpu.memory_space<semaphore_mem>> -> memref<1x1x!tpu.dma_semaphore, #tpu.memory_space<semaphore_mem>>
        %136 = tpu.memref_squeeze %135 : memref<1x1x!tpu.dma_semaphore, #tpu.memory_space<semaphore_mem>> -> memref<!tpu.dma_semaphore, #tpu.memory_space<semaphore_mem>>
        tpu.enqueue_dma source(%132 : memref<1x128xf32, #tpu.memory_space<any>>) target(%134 : memref<1x128xf32, #tpu.memory_space<vmem>>) target_semaphore(%136 : memref<!tpu.dma_semaphore, #tpu.memory_space<semaphore_mem>>)
        %c0_i32_83 = arith.constant 0 : i32
        %c1_i32_84 = arith.constant 1 : i32
        %c0_i32_85 = arith.constant 0 : i32
        %c0_i32_86 = arith.constant 0 : i32
        %137 = tpu.memref_slice %arg5[%131, %c0_i32_86] : memref<48x128xf32, #tpu.memory_space<any>> -> memref<1x128xf32, #tpu.memory_space<any>>
        %c0_i32_87 = arith.constant 0 : i32
        %138 = tpu.memref_slice %arg8[%c0_i32_83, %125, %c0_i32_87] : memref<2x128x128xf32, #tpu.memory_space<vmem>> -> memref<1x1x128xf32, #tpu.memory_space<vmem>>
        %139 = tpu.memref_squeeze %138 : memref<1x1x128xf32, #tpu.memory_space<vmem>> -> memref<1x128xf32, #tpu.memory_space<vmem>>
        %140 = tpu.memref_slice %arg9[%c1_i32_84, %c0_i32_85] : memref<2x2x!tpu.dma_semaphore, #tpu.memory_space<semaphore_mem>> -> memref<1x1x!tpu.dma_semaphore, #tpu.memory_space<semaphore_mem>>
        %141 = tpu.memref_squeeze %140 : memref<1x1x!tpu.dma_semaphore, #tpu.memory_space<semaphore_mem>> -> memref<!tpu.dma_semaphore, #tpu.memory_space<semaphore_mem>>
        tpu.enqueue_dma source(%137 : memref<1x128xf32, #tpu.memory_space<any>>) target(%139 : memref<1x128xf32, #tpu.memory_space<vmem>>) target_semaphore(%141 : memref<!tpu.dma_semaphore, #tpu.memory_space<semaphore_mem>>)
        %c5_i32 = arith.constant 5 : i32
        %142 = arith.addi %56, %c5_i32 : i32
        %143 = arith.addi %51, %142 : i32
        %144 = arith.index_cast %143 : i32 to index
        %145 = memref.load %arg2[%144] : memref<128xi32, #tpu.memory_space<smem>>
        %146 = arith.addi %51, %142 : i32
        %147 = arith.index_cast %146 : i32 to index
        %148 = memref.load %arg3[%147] : memref<128xi32, #tpu.memory_space<smem>>
        %c0_i32_88 = arith.constant 0 : i32
        %c0_i32_89 = arith.constant 0 : i32
        %c0_i32_90 = arith.constant 0 : i32
        %c0_i32_91 = arith.constant 0 : i32
        %149 = tpu.memref_slice %arg4[%145, %c0_i32_91] : memref<32x128xf32, #tpu.memory_space<any>> -> memref<1x128xf32, #tpu.memory_space<any>>
        %c0_i32_92 = arith.constant 0 : i32
        %150 = tpu.memref_slice %arg7[%c0_i32_88, %142, %c0_i32_92] : memref<2x128x128xf32, #tpu.memory_space<vmem>> -> memref<1x1x128xf32, #tpu.memory_space<vmem>>
        %151 = tpu.memref_squeeze %150 : memref<1x1x128xf32, #tpu.memory_space<vmem>> -> memref<1x128xf32, #tpu.memory_space<vmem>>
        %152 = tpu.memref_slice %arg9[%c0_i32_89, %c0_i32_90] : memref<2x2x!tpu.dma_semaphore, #tpu.memory_space<semaphore_mem>> -> memref<1x1x!tpu.dma_semaphore, #tpu.memory_space<semaphore_mem>>
        %153 = tpu.memref_squeeze %152 : memref<1x1x!tpu.dma_semaphore, #tpu.memory_space<semaphore_mem>> -> memref<!tpu.dma_semaphore, #tpu.memory_space<semaphore_mem>>
        tpu.enqueue_dma source(%149 : memref<1x128xf32, #tpu.memory_space<any>>) target(%151 : memref<1x128xf32, #tpu.memory_space<vmem>>) target_semaphore(%153 : memref<!tpu.dma_semaphore, #tpu.memory_space<semaphore_mem>>)
        %c0_i32_93 = arith.constant 0 : i32
        %c1_i32_94 = arith.constant 1 : i32
        %c0_i32_95 = arith.constant 0 : i32
        %c0_i32_96 = arith.constant 0 : i32
        %154 = tpu.memref_slice %arg5[%148, %c0_i32_96] : memref<48x128xf32, #tpu.memory_space<any>> -> memref<1x128xf32, #tpu.memory_space<any>>
        %c0_i32_97 = arith.constant 0 : i32
        %155 = tpu.memref_slice %arg8[%c0_i32_93, %142, %c0_i32_97] : memref<2x128x128xf32, #tpu.memory_space<vmem>> -> memref<1x1x128xf32, #tpu.memory_space<vmem>>
        %156 = tpu.memref_squeeze %155 : memref<1x1x128xf32, #tpu.memory_space<vmem>> -> memref<1x128xf32, #tpu.memory_space<vmem>>
        %157 = tpu.memref_slice %arg9[%c1_i32_94, %c0_i32_95] : memref<2x2x!tpu.dma_semaphore, #tpu.memory_space<semaphore_mem>> -> memref<1x1x!tpu.dma_semaphore, #tpu.memory_space<semaphore_mem>>
        %158 = tpu.memref_squeeze %157 : memref<1x1x!tpu.dma_semaphore, #tpu.memory_space<semaphore_mem>> -> memref<!tpu.dma_semaphore, #tpu.memory_space<semaphore_mem>>
        tpu.enqueue_dma source(%154 : memref<1x128xf32, #tpu.memory_space<any>>) target(%156 : memref<1x128xf32, #tpu.memory_space<vmem>>) target_semaphore(%158 : memref<!tpu.dma_semaphore, #tpu.memory_space<semaphore_mem>>)
        %c6_i32 = arith.constant 6 : i32
        %159 = arith.addi %56, %c6_i32 : i32
        %160 = arith.addi %51, %159 : i32
        %161 = arith.index_cast %160 : i32 to index
        %162 = memref.load %arg2[%161] : memref<128xi32, #tpu.memory_space<smem>>
        %163 = arith.addi %51, %159 : i32
        %164 = arith.index_cast %163 : i32 to index
        %165 = memref.load %arg3[%164] : memref<128xi32, #tpu.memory_space<smem>>
        %c0_i32_98 = arith.constant 0 : i32
        %c0_i32_99 = arith.constant 0 : i32
        %c0_i32_100 = arith.constant 0 : i32
        %c0_i32_101 = arith.constant 0 : i32
        %166 = tpu.memref_slice %arg4[%162, %c0_i32_101] : memref<32x128xf32, #tpu.memory_space<any>> -> memref<1x128xf32, #tpu.memory_space<any>>
        %c0_i32_102 = arith.constant 0 : i32
        %167 = tpu.memref_slice %arg7[%c0_i32_98, %159, %c0_i32_102] : memref<2x128x128xf32, #tpu.memory_space<vmem>> -> memref<1x1x128xf32, #tpu.memory_space<vmem>>
        %168 = tpu.memref_squeeze %167 : memref<1x1x128xf32, #tpu.memory_space<vmem>> -> memref<1x128xf32, #tpu.memory_space<vmem>>
        %169 = tpu.memref_slice %arg9[%c0_i32_99, %c0_i32_100] : memref<2x2x!tpu.dma_semaphore, #tpu.memory_space<semaphore_mem>> -> memref<1x1x!tpu.dma_semaphore, #tpu.memory_space<semaphore_mem>>
        %170 = tpu.memref_squeeze %169 : memref<1x1x!tpu.dma_semaphore, #tpu.memory_space<semaphore_mem>> -> memref<!tpu.dma_semaphore, #tpu.memory_space<semaphore_mem>>
        tpu.enqueue_dma source(%166 : memref<1x128xf32, #tpu.memory_space<any>>) target(%168 : memref<1x128xf32, #tpu.memory_space<vmem>>) target_semaphore(%170 : memref<!tpu.dma_semaphore, #tpu.memory_space<semaphore_mem>>)
        %c0_i32_103 = arith.constant 0 : i32
        %c1_i32_104 = arith.constant 1 : i32
        %c0_i32_105 = arith.constant 0 : i32
        %c0_i32_106 = arith.constant 0 : i32
        %171 = tpu.memref_slice %arg5[%165, %c0_i32_106] : memref<48x128xf32, #tpu.memory_space<any>> -> memref<1x128xf32, #tpu.memory_space<any>>
        %c0_i32_107 = arith.constant 0 : i32
        %172 = tpu.memref_slice %arg8[%c0_i32_103, %159, %c0_i32_107] : memref<2x128x128xf32, #tpu.memory_space<vmem>> -> memref<1x1x128xf32, #tpu.memory_space<vmem>>
        %173 = tpu.memref_squeeze %172 : memref<1x1x128xf32, #tpu.memory_space<vmem>> -> memref<1x128xf32, #tpu.memory_space<vmem>>
        %174 = tpu.memref_slice %arg9[%c1_i32_104, %c0_i32_105] : memref<2x2x!tpu.dma_semaphore, #tpu.memory_space<semaphore_mem>> -> memref<1x1x!tpu.dma_semaphore, #tpu.memory_space<semaphore_mem>>
        %175 = tpu.memref_squeeze %174 : memref<1x1x!tpu.dma_semaphore, #tpu.memory_space<semaphore_mem>> -> memref<!tpu.dma_semaphore, #tpu.memory_space<semaphore_mem>>
        tpu.enqueue_dma source(%171 : memref<1x128xf32, #tpu.memory_space<any>>) target(%173 : memref<1x128xf32, #tpu.memory_space<vmem>>) target_semaphore(%175 : memref<!tpu.dma_semaphore, #tpu.memory_space<semaphore_mem>>)
        %c7_i32 = arith.constant 7 : i32
        %176 = arith.addi %56, %c7_i32 : i32
        %177 = arith.addi %51, %176 : i32
        %178 = arith.index_cast %177 : i32 to index
        %179 = memref.load %arg2[%178] : memref<128xi32, #tpu.memory_space<smem>>
        %180 = arith.addi %51, %176 : i32
        %181 = arith.index_cast %180 : i32 to index
        %182 = memref.load %arg3[%181] : memref<128xi32, #tpu.memory_space<smem>>
        %c0_i32_108 = arith.constant 0 : i32
        %c0_i32_109 = arith.constant 0 : i32
        %c0_i32_110 = arith.constant 0 : i32
        %c0_i32_111 = arith.constant 0 : i32
        %183 = tpu.memref_slice %arg4[%179, %c0_i32_111] : memref<32x128xf32, #tpu.memory_space<any>> -> memref<1x128xf32, #tpu.memory_space<any>>
        %c0_i32_112 = arith.constant 0 : i32
        %184 = tpu.memref_slice %arg7[%c0_i32_108, %176, %c0_i32_112] : memref<2x128x128xf32, #tpu.memory_space<vmem>> -> memref<1x1x128xf32, #tpu.memory_space<vmem>>
        %185 = tpu.memref_squeeze %184 : memref<1x1x128xf32, #tpu.memory_space<vmem>> -> memref<1x128xf32, #tpu.memory_space<vmem>>
        %186 = tpu.memref_slice %arg9[%c0_i32_109, %c0_i32_110] : memref<2x2x!tpu.dma_semaphore, #tpu.memory_space<semaphore_mem>> -> memref<1x1x!tpu.dma_semaphore, #tpu.memory_space<semaphore_mem>>
        %187 = tpu.memref_squeeze %186 : memref<1x1x!tpu.dma_semaphore, #tpu.memory_space<semaphore_mem>> -> memref<!tpu.dma_semaphore, #tpu.memory_space<semaphore_mem>>
        tpu.enqueue_dma source(%183 : memref<1x128xf32, #tpu.memory_space<any>>) target(%185 : memref<1x128xf32, #tpu.memory_space<vmem>>) target_semaphore(%187 : memref<!tpu.dma_semaphore, #tpu.memory_space<semaphore_mem>>)
        %c0_i32_113 = arith.constant 0 : i32
        %c1_i32_114 = arith.constant 1 : i32
        %c0_i32_115 = arith.constant 0 : i32
        %c0_i32_116 = arith.constant 0 : i32
        %188 = tpu.memref_slice %arg5[%182, %c0_i32_116] : memref<48x128xf32, #tpu.memory_space<any>> -> memref<1x128xf32, #tpu.memory_space<any>>
        %c0_i32_117 = arith.constant 0 : i32
        %189 = tpu.memref_slice %arg8[%c0_i32_113, %176, %c0_i32_117] : memref<2x128x128xf32, #tpu.memory_space<vmem>> -> memref<1x1x128xf32, #tpu.memory_space<vmem>>
        %190 = tpu.memref_squeeze %189 : memref<1x1x128xf32, #tpu.memory_space<vmem>> -> memref<1x128xf32, #tpu.memory_space<vmem>>
        %191 = tpu.memref_slice %arg9[%c1_i32_114, %c0_i32_115] : memref<2x2x!tpu.dma_semaphore, #tpu.memory_space<semaphore_mem>> -> memref<1x1x!tpu.dma_semaphore, #tpu.memory_space<semaphore_mem>>
        %192 = tpu.memref_squeeze %191 : memref<1x1x!tpu.dma_semaphore, #tpu.memory_space<semaphore_mem>> -> memref<!tpu.dma_semaphore, #tpu.memory_space<semaphore_mem>>
        tpu.enqueue_dma source(%188 : memref<1x128xf32, #tpu.memory_space<any>>) target(%190 : memref<1x128xf32, #tpu.memory_space<vmem>>) target_semaphore(%192 : memref<!tpu.dma_semaphore, #tpu.memory_space<semaphore_mem>>)
      }
      %c16_i32_32 = arith.constant 16 : i32
    } else {
    }
    %c1_i32_6 = arith.constant 1 : i32
    %15 = arith.addi %arg1, %c1_i32_6 : i32
    %c1_i32_7 = arith.constant 1 : i32
    %16 = arith.cmpi slt, %15, %c1_i32_7 : i32
    %17 = arith.extui %16 : i1 to i32
    %c0_i32_8 = arith.constant 0 : i32
    %18 = arith.cmpi ne, %17, %c0_i32_8 : i32
    scf.if %18 {
      %c1_i32_30 = arith.constant 1 : i32
      %51 = arith.addi %1, %c1_i32_30 : i32
      %c1_i32_31 = arith.constant 1 : i32
      %52 = arith.subi %c1_i32_31, %11 : i32
      %c128_i32 = arith.constant 128 : i32
      %53 = arith.muli %51, %c128_i32 : i32
      %c0_i32_32 = arith.constant 0 : i32
      %c16_i32 = arith.constant 16 : i32
      %54 = arith.addi %c0_i32_32, %c16_i32 : i32
      %c1_i32_33 = arith.constant 1 : i32
      scf.for %arg10 = %c0_i32_32 to %54 step %c1_i32_33  : i32 {
        %c1_i32_35 = arith.constant 1 : i32
        %55 = arith.muli %arg10, %c1_i32_35 : i32
        %c0_i32_36 = arith.constant 0 : i32
        %56 = arith.addi %c0_i32_36, %55 : i32
        %c8_i32 = arith.constant 8 : i32
        %57 = arith.muli %56, %c8_i32 : i32
        %58 = tpu.assume_multiple %57, 8 : i32
        %c0_i32_37 = arith.constant 0 : i32
        %59 = arith.addi %58, %c0_i32_37 : i32
        %60 = arith.addi %53, %59 : i32
        %61 = arith.index_cast %60 : i32 to index
        %62 = memref.load %arg2[%61] : memref<128xi32, #tpu.memory_space<smem>>
        %63 = arith.addi %53, %59 : i32
        %64 = arith.index_cast %63 : i32 to index
        %65 = memref.load %arg3[%64] : memref<128xi32, #tpu.memory_space<smem>>
        %c0_i32_38 = arith.constant 0 : i32
        %c0_i32_39 = arith.constant 0 : i32
        %66 = tpu.memref_slice %arg4[%62, %c0_i32_39] : memref<32x128xf32, #tpu.memory_space<any>> -> memref<1x128xf32, #tpu.memory_space<any>>
        %c0_i32_40 = arith.constant 0 : i32
        %67 = tpu.memref_slice %arg7[%52, %59, %c0_i32_40] : memref<2x128x128xf32, #tpu.memory_space<vmem>> -> memref<1x1x128xf32, #tpu.memory_space<vmem>>
        %68 = tpu.memref_squeeze %67 : memref<1x1x128xf32, #tpu.memory_space<vmem>> -> memref<1x128xf32, #tpu.memory_space<vmem>>
        %69 = tpu.memref_slice %arg9[%c0_i32_38, %52] : memref<2x2x!tpu.dma_semaphore, #tpu.memory_space<semaphore_mem>> -> memref<1x1x!tpu.dma_semaphore, #tpu.memory_space<semaphore_mem>>
        %70 = tpu.memref_squeeze %69 : memref<1x1x!tpu.dma_semaphore, #tpu.memory_space<semaphore_mem>> -> memref<!tpu.dma_semaphore, #tpu.memory_space<semaphore_mem>>
        tpu.enqueue_dma source(%66 : memref<1x128xf32, #tpu.memory_space<any>>) target(%68 : memref<1x128xf32, #tpu.memory_space<vmem>>) target_semaphore(%70 : memref<!tpu.dma_semaphore, #tpu.memory_space<semaphore_mem>>)
        %c1_i32_41 = arith.constant 1 : i32
        %c0_i32_42 = arith.constant 0 : i32
        %71 = tpu.memref_slice %arg5[%65, %c0_i32_42] : memref<48x128xf32, #tpu.memory_space<any>> -> memref<1x128xf32, #tpu.memory_space<any>>
        %c0_i32_43 = arith.constant 0 : i32
        %72 = tpu.memref_slice %arg8[%52, %59, %c0_i32_43] : memref<2x128x128xf32, #tpu.memory_space<vmem>> -> memref<1x1x128xf32, #tpu.memory_space<vmem>>
        %73 = tpu.memref_squeeze %72 : memref<1x1x128xf32, #tpu.memory_space<vmem>> -> memref<1x128xf32, #tpu.memory_space<vmem>>
        %74 = tpu.memref_slice %arg9[%c1_i32_41, %52] : memref<2x2x!tpu.dma_semaphore, #tpu.memory_space<semaphore_mem>> -> memref<1x1x!tpu.dma_semaphore, #tpu.memory_space<semaphore_mem>>
        %75 = tpu.memref_squeeze %74 : memref<1x1x!tpu.dma_semaphore, #tpu.memory_space<semaphore_mem>> -> memref<!tpu.dma_semaphore, #tpu.memory_space<semaphore_mem>>
        tpu.enqueue_dma source(%71 : memref<1x128xf32, #tpu.memory_space<any>>) target(%73 : memref<1x128xf32, #tpu.memory_space<vmem>>) target_semaphore(%75 : memref<!tpu.dma_semaphore, #tpu.memory_space<semaphore_mem>>)
        %c1_i32_44 = arith.constant 1 : i32
        %76 = arith.addi %58, %c1_i32_44 : i32
        %77 = arith.addi %53, %76 : i32
        %78 = arith.index_cast %77 : i32 to index
        %79 = memref.load %arg2[%78] : memref<128xi32, #tpu.memory_space<smem>>
        %80 = arith.addi %53, %76 : i32
        %81 = arith.index_cast %80 : i32 to index
        %82 = memref.load %arg3[%81] : memref<128xi32, #tpu.memory_space<smem>>
        %c0_i32_45 = arith.constant 0 : i32
        %c0_i32_46 = arith.constant 0 : i32
        %83 = tpu.memref_slice %arg4[%79, %c0_i32_46] : memref<32x128xf32, #tpu.memory_space<any>> -> memref<1x128xf32, #tpu.memory_space<any>>
        %c0_i32_47 = arith.constant 0 : i32
        %84 = tpu.memref_slice %arg7[%52, %76, %c0_i32_47] : memref<2x128x128xf32, #tpu.memory_space<vmem>> -> memref<1x1x128xf32, #tpu.memory_space<vmem>>
        %85 = tpu.memref_squeeze %84 : memref<1x1x128xf32, #tpu.memory_space<vmem>> -> memref<1x128xf32, #tpu.memory_space<vmem>>
        %86 = tpu.memref_slice %arg9[%c0_i32_45, %52] : memref<2x2x!tpu.dma_semaphore, #tpu.memory_space<semaphore_mem>> -> memref<1x1x!tpu.dma_semaphore, #tpu.memory_space<semaphore_mem>>
        %87 = tpu.memref_squeeze %86 : memref<1x1x!tpu.dma_semaphore, #tpu.memory_space<semaphore_mem>> -> memref<!tpu.dma_semaphore, #tpu.memory_space<semaphore_mem>>
        tpu.enqueue_dma source(%83 : memref<1x128xf32, #tpu.memory_space<any>>) target(%85 : memref<1x128xf32, #tpu.memory_space<vmem>>) target_semaphore(%87 : memref<!tpu.dma_semaphore, #tpu.memory_space<semaphore_mem>>)
        %c1_i32_48 = arith.constant 1 : i32
        %c0_i32_49 = arith.constant 0 : i32
        %88 = tpu.memref_slice %arg5[%82, %c0_i32_49] : memref<48x128xf32, #tpu.memory_space<any>> -> memref<1x128xf32, #tpu.memory_space<any>>
        %c0_i32_50 = arith.constant 0 : i32
        %89 = tpu.memref_slice %arg8[%52, %76, %c0_i32_50] : memref<2x128x128xf32, #tpu.memory_space<vmem>> -> memref<1x1x128xf32, #tpu.memory_space<vmem>>
        %90 = tpu.memref_squeeze %89 : memref<1x1x128xf32, #tpu.memory_space<vmem>> -> memref<1x128xf32, #tpu.memory_space<vmem>>
        %91 = tpu.memref_slice %arg9[%c1_i32_48, %52] : memref<2x2x!tpu.dma_semaphore, #tpu.memory_space<semaphore_mem>> -> memref<1x1x!tpu.dma_semaphore, #tpu.memory_space<semaphore_mem>>
        %92 = tpu.memref_squeeze %91 : memref<1x1x!tpu.dma_semaphore, #tpu.memory_space<semaphore_mem>> -> memref<!tpu.dma_semaphore, #tpu.memory_space<semaphore_mem>>
        tpu.enqueue_dma source(%88 : memref<1x128xf32, #tpu.memory_space<any>>) target(%90 : memref<1x128xf32, #tpu.memory_space<vmem>>) target_semaphore(%92 : memref<!tpu.dma_semaphore, #tpu.memory_space<semaphore_mem>>)
        %c2_i32_51 = arith.constant 2 : i32
        %93 = arith.addi %58, %c2_i32_51 : i32
        %94 = arith.addi %53, %93 : i32
        %95 = arith.index_cast %94 : i32 to index
        %96 = memref.load %arg2[%95] : memref<128xi32, #tpu.memory_space<smem>>
        %97 = arith.addi %53, %93 : i32
        %98 = arith.index_cast %97 : i32 to index
        %99 = memref.load %arg3[%98] : memref<128xi32, #tpu.memory_space<smem>>
        %c0_i32_52 = arith.constant 0 : i32
        %c0_i32_53 = arith.constant 0 : i32
        %100 = tpu.memref_slice %arg4[%96, %c0_i32_53] : memref<32x128xf32, #tpu.memory_space<any>> -> memref<1x128xf32, #tpu.memory_space<any>>
        %c0_i32_54 = arith.constant 0 : i32
        %101 = tpu.memref_slice %arg7[%52, %93, %c0_i32_54] : memref<2x128x128xf32, #tpu.memory_space<vmem>> -> memref<1x1x128xf32, #tpu.memory_space<vmem>>
        %102 = tpu.memref_squeeze %101 : memref<1x1x128xf32, #tpu.memory_space<vmem>> -> memref<1x128xf32, #tpu.memory_space<vmem>>
        %103 = tpu.memref_slice %arg9[%c0_i32_52, %52] : memref<2x2x!tpu.dma_semaphore, #tpu.memory_space<semaphore_mem>> -> memref<1x1x!tpu.dma_semaphore, #tpu.memory_space<semaphore_mem>>
        %104 = tpu.memref_squeeze %103 : memref<1x1x!tpu.dma_semaphore, #tpu.memory_space<semaphore_mem>> -> memref<!tpu.dma_semaphore, #tpu.memory_space<semaphore_mem>>
        tpu.enqueue_dma source(%100 : memref<1x128xf32, #tpu.memory_space<any>>) target(%102 : memref<1x128xf32, #tpu.memory_space<vmem>>) target_semaphore(%104 : memref<!tpu.dma_semaphore, #tpu.memory_space<semaphore_mem>>)
        %c1_i32_55 = arith.constant 1 : i32
        %c0_i32_56 = arith.constant 0 : i32
        %105 = tpu.memref_slice %arg5[%99, %c0_i32_56] : memref<48x128xf32, #tpu.memory_space<any>> -> memref<1x128xf32, #tpu.memory_space<any>>
        %c0_i32_57 = arith.constant 0 : i32
        %106 = tpu.memref_slice %arg8[%52, %93, %c0_i32_57] : memref<2x128x128xf32, #tpu.memory_space<vmem>> -> memref<1x1x128xf32, #tpu.memory_space<vmem>>
        %107 = tpu.memref_squeeze %106 : memref<1x1x128xf32, #tpu.memory_space<vmem>> -> memref<1x128xf32, #tpu.memory_space<vmem>>
        %108 = tpu.memref_slice %arg9[%c1_i32_55, %52] : memref<2x2x!tpu.dma_semaphore, #tpu.memory_space<semaphore_mem>> -> memref<1x1x!tpu.dma_semaphore, #tpu.memory_space<semaphore_mem>>
        %109 = tpu.memref_squeeze %108 : memref<1x1x!tpu.dma_semaphore, #tpu.memory_space<semaphore_mem>> -> memref<!tpu.dma_semaphore, #tpu.memory_space<semaphore_mem>>
        tpu.enqueue_dma source(%105 : memref<1x128xf32, #tpu.memory_space<any>>) target(%107 : memref<1x128xf32, #tpu.memory_space<vmem>>) target_semaphore(%109 : memref<!tpu.dma_semaphore, #tpu.memory_space<semaphore_mem>>)
        %c3_i32 = arith.constant 3 : i32
        %110 = arith.addi %58, %c3_i32 : i32
        %111 = arith.addi %53, %110 : i32
        %112 = arith.index_cast %111 : i32 to index
        %113 = memref.load %arg2[%112] : memref<128xi32, #tpu.memory_space<smem>>
        %114 = arith.addi %53, %110 : i32
        %115 = arith.index_cast %114 : i32 to index
        %116 = memref.load %arg3[%115] : memref<128xi32, #tpu.memory_space<smem>>
        %c0_i32_58 = arith.constant 0 : i32
        %c0_i32_59 = arith.constant 0 : i32
        %117 = tpu.memref_slice %arg4[%113, %c0_i32_59] : memref<32x128xf32, #tpu.memory_space<any>> -> memref<1x128xf32, #tpu.memory_space<any>>
        %c0_i32_60 = arith.constant 0 : i32
        %118 = tpu.memref_slice %arg7[%52, %110, %c0_i32_60] : memref<2x128x128xf32, #tpu.memory_space<vmem>> -> memref<1x1x128xf32, #tpu.memory_space<vmem>>
        %119 = tpu.memref_squeeze %118 : memref<1x1x128xf32, #tpu.memory_space<vmem>> -> memref<1x128xf32, #tpu.memory_space<vmem>>
        %120 = tpu.memref_slice %arg9[%c0_i32_58, %52] : memref<2x2x!tpu.dma_semaphore, #tpu.memory_space<semaphore_mem>> -> memref<1x1x!tpu.dma_semaphore, #tpu.memory_space<semaphore_mem>>
        %121 = tpu.memref_squeeze %120 : memref<1x1x!tpu.dma_semaphore, #tpu.memory_space<semaphore_mem>> -> memref<!tpu.dma_semaphore, #tpu.memory_space<semaphore_mem>>
        tpu.enqueue_dma source(%117 : memref<1x128xf32, #tpu.memory_space<any>>) target(%119 : memref<1x128xf32, #tpu.memory_space<vmem>>) target_semaphore(%121 : memref<!tpu.dma_semaphore, #tpu.memory_space<semaphore_mem>>)
        %c1_i32_61 = arith.constant 1 : i32
        %c0_i32_62 = arith.constant 0 : i32
        %122 = tpu.memref_slice %arg5[%116, %c0_i32_62] : memref<48x128xf32, #tpu.memory_space<any>> -> memref<1x128xf32, #tpu.memory_space<any>>
        %c0_i32_63 = arith.constant 0 : i32
        %123 = tpu.memref_slice %arg8[%52, %110, %c0_i32_63] : memref<2x128x128xf32, #tpu.memory_space<vmem>> -> memref<1x1x128xf32, #tpu.memory_space<vmem>>
        %124 = tpu.memref_squeeze %123 : memref<1x1x128xf32, #tpu.memory_space<vmem>> -> memref<1x128xf32, #tpu.memory_space<vmem>>
        %125 = tpu.memref_slice %arg9[%c1_i32_61, %52] : memref<2x2x!tpu.dma_semaphore, #tpu.memory_space<semaphore_mem>> -> memref<1x1x!tpu.dma_semaphore, #tpu.memory_space<semaphore_mem>>
        %126 = tpu.memref_squeeze %125 : memref<1x1x!tpu.dma_semaphore, #tpu.memory_space<semaphore_mem>> -> memref<!tpu.dma_semaphore, #tpu.memory_space<semaphore_mem>>
        tpu.enqueue_dma source(%122 : memref<1x128xf32, #tpu.memory_space<any>>) target(%124 : memref<1x128xf32, #tpu.memory_space<vmem>>) target_semaphore(%126 : memref<!tpu.dma_semaphore, #tpu.memory_space<semaphore_mem>>)
        %c4_i32 = arith.constant 4 : i32
        %127 = arith.addi %58, %c4_i32 : i32
        %128 = arith.addi %53, %127 : i32
        %129 = arith.index_cast %128 : i32 to index
        %130 = memref.load %arg2[%129] : memref<128xi32, #tpu.memory_space<smem>>
        %131 = arith.addi %53, %127 : i32
        %132 = arith.index_cast %131 : i32 to index
        %133 = memref.load %arg3[%132] : memref<128xi32, #tpu.memory_space<smem>>
        %c0_i32_64 = arith.constant 0 : i32
        %c0_i32_65 = arith.constant 0 : i32
        %134 = tpu.memref_slice %arg4[%130, %c0_i32_65] : memref<32x128xf32, #tpu.memory_space<any>> -> memref<1x128xf32, #tpu.memory_space<any>>
        %c0_i32_66 = arith.constant 0 : i32
        %135 = tpu.memref_slice %arg7[%52, %127, %c0_i32_66] : memref<2x128x128xf32, #tpu.memory_space<vmem>> -> memref<1x1x128xf32, #tpu.memory_space<vmem>>
        %136 = tpu.memref_squeeze %135 : memref<1x1x128xf32, #tpu.memory_space<vmem>> -> memref<1x128xf32, #tpu.memory_space<vmem>>
        %137 = tpu.memref_slice %arg9[%c0_i32_64, %52] : memref<2x2x!tpu.dma_semaphore, #tpu.memory_space<semaphore_mem>> -> memref<1x1x!tpu.dma_semaphore, #tpu.memory_space<semaphore_mem>>
        %138 = tpu.memref_squeeze %137 : memref<1x1x!tpu.dma_semaphore, #tpu.memory_space<semaphore_mem>> -> memref<!tpu.dma_semaphore, #tpu.memory_space<semaphore_mem>>
        tpu.enqueue_dma source(%134 : memref<1x128xf32, #tpu.memory_space<any>>) target(%136 : memref<1x128xf32, #tpu.memory_space<vmem>>) target_semaphore(%138 : memref<!tpu.dma_semaphore, #tpu.memory_space<semaphore_mem>>)
        %c1_i32_67 = arith.constant 1 : i32
        %c0_i32_68 = arith.constant 0 : i32
        %139 = tpu.memref_slice %arg5[%133, %c0_i32_68] : memref<48x128xf32, #tpu.memory_space<any>> -> memref<1x128xf32, #tpu.memory_space<any>>
        %c0_i32_69 = arith.constant 0 : i32
        %140 = tpu.memref_slice %arg8[%52, %127, %c0_i32_69] : memref<2x128x128xf32, #tpu.memory_space<vmem>> -> memref<1x1x128xf32, #tpu.memory_space<vmem>>
        %141 = tpu.memref_squeeze %140 : memref<1x1x128xf32, #tpu.memory_space<vmem>> -> memref<1x128xf32, #tpu.memory_space<vmem>>
        %142 = tpu.memref_slice %arg9[%c1_i32_67, %52] : memref<2x2x!tpu.dma_semaphore, #tpu.memory_space<semaphore_mem>> -> memref<1x1x!tpu.dma_semaphore, #tpu.memory_space<semaphore_mem>>
        %143 = tpu.memref_squeeze %142 : memref<1x1x!tpu.dma_semaphore, #tpu.memory_space<semaphore_mem>> -> memref<!tpu.dma_semaphore, #tpu.memory_space<semaphore_mem>>
        tpu.enqueue_dma source(%139 : memref<1x128xf32, #tpu.memory_space<any>>) target(%141 : memref<1x128xf32, #tpu.memory_space<vmem>>) target_semaphore(%143 : memref<!tpu.dma_semaphore, #tpu.memory_space<semaphore_mem>>)
        %c5_i32 = arith.constant 5 : i32
        %144 = arith.addi %58, %c5_i32 : i32
        %145 = arith.addi %53, %144 : i32
        %146 = arith.index_cast %145 : i32 to index
        %147 = memref.load %arg2[%146] : memref<128xi32, #tpu.memory_space<smem>>
        %148 = arith.addi %53, %144 : i32
        %149 = arith.index_cast %148 : i32 to index
        %150 = memref.load %arg3[%149] : memref<128xi32, #tpu.memory_space<smem>>
        %c0_i32_70 = arith.constant 0 : i32
        %c0_i32_71 = arith.constant 0 : i32
        %151 = tpu.memref_slice %arg4[%147, %c0_i32_71] : memref<32x128xf32, #tpu.memory_space<any>> -> memref<1x128xf32, #tpu.memory_space<any>>
        %c0_i32_72 = arith.constant 0 : i32
        %152 = tpu.memref_slice %arg7[%52, %144, %c0_i32_72] : memref<2x128x128xf32, #tpu.memory_space<vmem>> -> memref<1x1x128xf32, #tpu.memory_space<vmem>>
        %153 = tpu.memref_squeeze %152 : memref<1x1x128xf32, #tpu.memory_space<vmem>> -> memref<1x128xf32, #tpu.memory_space<vmem>>
        %154 = tpu.memref_slice %arg9[%c0_i32_70, %52] : memref<2x2x!tpu.dma_semaphore, #tpu.memory_space<semaphore_mem>> -> memref<1x1x!tpu.dma_semaphore, #tpu.memory_space<semaphore_mem>>
        %155 = tpu.memref_squeeze %154 : memref<1x1x!tpu.dma_semaphore, #tpu.memory_space<semaphore_mem>> -> memref<!tpu.dma_semaphore, #tpu.memory_space<semaphore_mem>>
        tpu.enqueue_dma source(%151 : memref<1x128xf32, #tpu.memory_space<any>>) target(%153 : memref<1x128xf32, #tpu.memory_space<vmem>>) target_semaphore(%155 : memref<!tpu.dma_semaphore, #tpu.memory_space<semaphore_mem>>)
        %c1_i32_73 = arith.constant 1 : i32
        %c0_i32_74 = arith.constant 0 : i32
        %156 = tpu.memref_slice %arg5[%150, %c0_i32_74] : memref<48x128xf32, #tpu.memory_space<any>> -> memref<1x128xf32, #tpu.memory_space<any>>
        %c0_i32_75 = arith.constant 0 : i32
        %157 = tpu.memref_slice %arg8[%52, %144, %c0_i32_75] : memref<2x128x128xf32, #tpu.memory_space<vmem>> -> memref<1x1x128xf32, #tpu.memory_space<vmem>>
        %158 = tpu.memref_squeeze %157 : memref<1x1x128xf32, #tpu.memory_space<vmem>> -> memref<1x128xf32, #tpu.memory_space<vmem>>
        %159 = tpu.memref_slice %arg9[%c1_i32_73, %52] : memref<2x2x!tpu.dma_semaphore, #tpu.memory_space<semaphore_mem>> -> memref<1x1x!tpu.dma_semaphore, #tpu.memory_space<semaphore_mem>>
        %160 = tpu.memref_squeeze %159 : memref<1x1x!tpu.dma_semaphore, #tpu.memory_space<semaphore_mem>> -> memref<!tpu.dma_semaphore, #tpu.memory_space<semaphore_mem>>
        tpu.enqueue_dma source(%156 : memref<1x128xf32, #tpu.memory_space<any>>) target(%158 : memref<1x128xf32, #tpu.memory_space<vmem>>) target_semaphore(%160 : memref<!tpu.dma_semaphore, #tpu.memory_space<semaphore_mem>>)
        %c6_i32 = arith.constant 6 : i32
        %161 = arith.addi %58, %c6_i32 : i32
        %162 = arith.addi %53, %161 : i32
        %163 = arith.index_cast %162 : i32 to index
        %164 = memref.load %arg2[%163] : memref<128xi32, #tpu.memory_space<smem>>
        %165 = arith.addi %53, %161 : i32
        %166 = arith.index_cast %165 : i32 to index
        %167 = memref.load %arg3[%166] : memref<128xi32, #tpu.memory_space<smem>>
        %c0_i32_76 = arith.constant 0 : i32
        %c0_i32_77 = arith.constant 0 : i32
        %168 = tpu.memref_slice %arg4[%164, %c0_i32_77] : memref<32x128xf32, #tpu.memory_space<any>> -> memref<1x128xf32, #tpu.memory_space<any>>
        %c0_i32_78 = arith.constant 0 : i32
        %169 = tpu.memref_slice %arg7[%52, %161, %c0_i32_78] : memref<2x128x128xf32, #tpu.memory_space<vmem>> -> memref<1x1x128xf32, #tpu.memory_space<vmem>>
        %170 = tpu.memref_squeeze %169 : memref<1x1x128xf32, #tpu.memory_space<vmem>> -> memref<1x128xf32, #tpu.memory_space<vmem>>
        %171 = tpu.memref_slice %arg9[%c0_i32_76, %52] : memref<2x2x!tpu.dma_semaphore, #tpu.memory_space<semaphore_mem>> -> memref<1x1x!tpu.dma_semaphore, #tpu.memory_space<semaphore_mem>>
        %172 = tpu.memref_squeeze %171 : memref<1x1x!tpu.dma_semaphore, #tpu.memory_space<semaphore_mem>> -> memref<!tpu.dma_semaphore, #tpu.memory_space<semaphore_mem>>
        tpu.enqueue_dma source(%168 : memref<1x128xf32, #tpu.memory_space<any>>) target(%170 : memref<1x128xf32, #tpu.memory_space<vmem>>) target_semaphore(%172 : memref<!tpu.dma_semaphore, #tpu.memory_space<semaphore_mem>>)
        %c1_i32_79 = arith.constant 1 : i32
        %c0_i32_80 = arith.constant 0 : i32
        %173 = tpu.memref_slice %arg5[%167, %c0_i32_80] : memref<48x128xf32, #tpu.memory_space<any>> -> memref<1x128xf32, #tpu.memory_space<any>>
        %c0_i32_81 = arith.constant 0 : i32
        %174 = tpu.memref_slice %arg8[%52, %161, %c0_i32_81] : memref<2x128x128xf32, #tpu.memory_space<vmem>> -> memref<1x1x128xf32, #tpu.memory_space<vmem>>
        %175 = tpu.memref_squeeze %174 : memref<1x1x128xf32, #tpu.memory_space<vmem>> -> memref<1x128xf32, #tpu.memory_space<vmem>>
        %176 = tpu.memref_slice %arg9[%c1_i32_79, %52] : memref<2x2x!tpu.dma_semaphore, #tpu.memory_space<semaphore_mem>> -> memref<1x1x!tpu.dma_semaphore, #tpu.memory_space<semaphore_mem>>
        %177 = tpu.memref_squeeze %176 : memref<1x1x!tpu.dma_semaphore, #tpu.memory_space<semaphore_mem>> -> memref<!tpu.dma_semaphore, #tpu.memory_space<semaphore_mem>>
        tpu.enqueue_dma source(%173 : memref<1x128xf32, #tpu.memory_space<any>>) target(%175 : memref<1x128xf32, #tpu.memory_space<vmem>>) target_semaphore(%177 : memref<!tpu.dma_semaphore, #tpu.memory_space<semaphore_mem>>)
        %c7_i32 = arith.constant 7 : i32
        %178 = arith.addi %58, %c7_i32 : i32
        %179 = arith.addi %53, %178 : i32
        %180 = arith.index_cast %179 : i32 to index
        %181 = memref.load %arg2[%180] : memref<128xi32, #tpu.memory_space<smem>>
        %182 = arith.addi %53, %178 : i32
        %183 = arith.index_cast %182 : i32 to index
        %184 = memref.load %arg3[%183] : memref<128xi32, #tpu.memory_space<smem>>
        %c0_i32_82 = arith.constant 0 : i32
        %c0_i32_83 = arith.constant 0 : i32
        %185 = tpu.memref_slice %arg4[%181, %c0_i32_83] : memref<32x128xf32, #tpu.memory_space<any>> -> memref<1x128xf32, #tpu.memory_space<any>>
        %c0_i32_84 = arith.constant 0 : i32
        %186 = tpu.memref_slice %arg7[%52, %178, %c0_i32_84] : memref<2x128x128xf32, #tpu.memory_space<vmem>> -> memref<1x1x128xf32, #tpu.memory_space<vmem>>
        %187 = tpu.memref_squeeze %186 : memref<1x1x128xf32, #tpu.memory_space<vmem>> -> memref<1x128xf32, #tpu.memory_space<vmem>>
        %188 = tpu.memref_slice %arg9[%c0_i32_82, %52] : memref<2x2x!tpu.dma_semaphore, #tpu.memory_space<semaphore_mem>> -> memref<1x1x!tpu.dma_semaphore, #tpu.memory_space<semaphore_mem>>
        %189 = tpu.memref_squeeze %188 : memref<1x1x!tpu.dma_semaphore, #tpu.memory_space<semaphore_mem>> -> memref<!tpu.dma_semaphore, #tpu.memory_space<semaphore_mem>>
        tpu.enqueue_dma source(%185 : memref<1x128xf32, #tpu.memory_space<any>>) target(%187 : memref<1x128xf32, #tpu.memory_space<vmem>>) target_semaphore(%189 : memref<!tpu.dma_semaphore, #tpu.memory_space<semaphore_mem>>)
        %c1_i32_85 = arith.constant 1 : i32
        %c0_i32_86 = arith.constant 0 : i32
        %190 = tpu.memref_slice %arg5[%184, %c0_i32_86] : memref<48x128xf32, #tpu.memory_space<any>> -> memref<1x128xf32, #tpu.memory_space<any>>
        %c0_i32_87 = arith.constant 0 : i32
        %191 = tpu.memref_slice %arg8[%52, %178, %c0_i32_87] : memref<2x128x128xf32, #tpu.memory_space<vmem>> -> memref<1x1x128xf32, #tpu.memory_space<vmem>>
        %192 = tpu.memref_squeeze %191 : memref<1x1x128xf32, #tpu.memory_space<vmem>> -> memref<1x128xf32, #tpu.memory_space<vmem>>
        %193 = tpu.memref_slice %arg9[%c1_i32_85, %52] : memref<2x2x!tpu.dma_semaphore, #tpu.memory_space<semaphore_mem>> -> memref<1x1x!tpu.dma_semaphore, #tpu.memory_space<semaphore_mem>>
        %194 = tpu.memref_squeeze %193 : memref<1x1x!tpu.dma_semaphore, #tpu.memory_space<semaphore_mem>> -> memref<!tpu.dma_semaphore, #tpu.memory_space<semaphore_mem>>
        tpu.enqueue_dma source(%190 : memref<1x128xf32, #tpu.memory_space<any>>) target(%192 : memref<1x128xf32, #tpu.memory_space<vmem>>) target_semaphore(%194 : memref<!tpu.dma_semaphore, #tpu.memory_space<semaphore_mem>>)
      }
      %c16_i32_34 = arith.constant 16 : i32
    } else {
    }
    %c0_i32_9 = arith.constant 0 : i32
    %c0_i32_10 = arith.constant 0 : i32
    %c0_i32_11 = arith.constant 0 : i32
    %19 = tpu.memref_slice %arg7[%11, %c0_i32_10, %c0_i32_11] : memref<2x128x128xf32, #tpu.memory_space<vmem>> -> memref<1x128x128xf32, #tpu.memory_space<vmem>>
    %20 = tpu.memref_squeeze %19 : memref<1x128x128xf32, #tpu.memory_space<vmem>> -> memref<128x128xf32, #tpu.memory_space<vmem>>
    %c0_i32_12 = arith.constant 0 : i32
    %c0_i32_13 = arith.constant 0 : i32
    %21 = tpu.memref_slice %arg7[%11, %c0_i32_12, %c0_i32_13] : memref<2x128x128xf32, #tpu.memory_space<vmem>> -> memref<1x128x128xf32, #tpu.memory_space<vmem>>
    %22 = tpu.memref_squeeze %21 : memref<1x128x128xf32, #tpu.memory_space<vmem>> -> memref<128x128xf32, #tpu.memory_space<vmem>>
    %23 = tpu.memref_slice %arg9[%c0_i32_9, %11] : memref<2x2x!tpu.dma_semaphore, #tpu.memory_space<semaphore_mem>> -> memref<1x1x!tpu.dma_semaphore, #tpu.memory_space<semaphore_mem>>
    %24 = tpu.memref_squeeze %23 : memref<1x1x!tpu.dma_semaphore, #tpu.memory_space<semaphore_mem>> -> memref<!tpu.dma_semaphore, #tpu.memory_space<semaphore_mem>>
    tpu.wait_dma2 semaphore(%24 : memref<!tpu.dma_semaphore, #tpu.memory_space<semaphore_mem>>) src(%20 : memref<128x128xf32, #tpu.memory_space<vmem>>) dst(%22 : memref<128x128xf32, #tpu.memory_space<vmem>>)
    %c1_i32_14 = arith.constant 1 : i32
    %c0_i32_15 = arith.constant 0 : i32
    %c0_i32_16 = arith.constant 0 : i32
    %25 = tpu.memref_slice %arg8[%11, %c0_i32_15, %c0_i32_16] : memref<2x128x128xf32, #tpu.memory_space<vmem>> -> memref<1x128x128xf32, #tpu.memory_space<vmem>>
    %26 = tpu.memref_squeeze %25 : memref<1x128x128xf32, #tpu.memory_space<vmem>> -> memref<128x128xf32, #tpu.memory_space<vmem>>
    %c0_i32_17 = arith.constant 0 : i32
    %c0_i32_18 = arith.constant 0 : i32
    %27 = tpu.memref_slice %arg8[%11, %c0_i32_17, %c0_i32_18] : memref<2x128x128xf32, #tpu.memory_space<vmem>> -> memref<1x128x128xf32, #tpu.memory_space<vmem>>
    %28 = tpu.memref_squeeze %27 : memref<1x128x128xf32, #tpu.memory_space<vmem>> -> memref<128x128xf32, #tpu.memory_space<vmem>>
    %29 = tpu.memref_slice %arg9[%c1_i32_14, %11] : memref<2x2x!tpu.dma_semaphore, #tpu.memory_space<semaphore_mem>> -> memref<1x1x!tpu.dma_semaphore, #tpu.memory_space<semaphore_mem>>
    %30 = tpu.memref_squeeze %29 : memref<1x1x!tpu.dma_semaphore, #tpu.memory_space<semaphore_mem>> -> memref<!tpu.dma_semaphore, #tpu.memory_space<semaphore_mem>>
    tpu.wait_dma2 semaphore(%30 : memref<!tpu.dma_semaphore, #tpu.memory_space<semaphore_mem>>) src(%26 : memref<128x128xf32, #tpu.memory_space<vmem>>) dst(%28 : memref<128x128xf32, #tpu.memory_space<vmem>>)
    %31 = arith.index_cast %11 : i32 to index
    %c0 = arith.constant 0 : index
    %c0_19 = arith.constant 0 : index
    %32 = vector.load %arg7[%31, %c0, %c0_19] : memref<2x128x128xf32, #tpu.memory_space<vmem>>, vector<1x64x128xf32>
    %33 = vector.shape_cast %32 : vector<1x64x128xf32> to vector<64x128xf32>
    %34 = arith.index_cast %11 : i32 to index
    %c0_20 = arith.constant 0 : index
    %c0_21 = arith.constant 0 : index
    %35 = vector.load %arg8[%34, %c0_20, %c0_21] : memref<2x128x128xf32, #tpu.memory_space<vmem>>, vector<1x64x128xf32>
    %36 = vector.shape_cast %35 : vector<1x64x128xf32> to vector<64x128xf32>
    %37 = arith.mulf %33, %36 : vector<64x128xf32>
    %cst = arith.constant dense<0.000000e+00> : vector<64xf32>
    %38 = vector.multi_reduction <add>, %37, %cst [1] : vector<64x128xf32> to vector<64xf32>
    %39 = vector.shape_cast %38 : vector<64xf32> to vector<1x64xf32>
    %c0_22 = arith.constant 0 : index
    %c0_23 = arith.constant 0 : index
    %40 = vector.load %arg6[%c0_22, %c0_23] : memref<1x128xf32, #tpu.memory_space<vmem>>, vector<1x64xf32>
    tpu.vector_store %arg6[%c0_22, %c0_23], %39 {strides = array<i32>} : memref<1x128xf32, #tpu.memory_space<vmem>>, vector<1x64xf32>,
    %41 = arith.index_cast %11 : i32 to index
    %c64 = arith.constant 64 : index
    %c0_24 = arith.constant 0 : index
    %42 = vector.load %arg7[%41, %c64, %c0_24] : memref<2x128x128xf32, #tpu.memory_space<vmem>>, vector<1x64x128xf32>
    %43 = vector.shape_cast %42 : vector<1x64x128xf32> to vector<64x128xf32>
    %44 = arith.index_cast %11 : i32 to index
    %c64_25 = arith.constant 64 : index
    %c0_26 = arith.constant 0 : index
    %45 = vector.load %arg8[%44, %c64_25, %c0_26] : memref<2x128x128xf32, #tpu.memory_space<vmem>>, vector<1x64x128xf32>
    %46 = vector.shape_cast %45 : vector<1x64x128xf32> to vector<64x128xf32>
    %47 = arith.mulf %43, %46 : vector<64x128xf32>
    %cst_27 = arith.constant dense<0.000000e+00> : vector<64xf32>
    %48 = vector.multi_reduction <add>, %47, %cst_27 [1] : vector<64x128xf32> to vector<64xf32>
    %49 = vector.shape_cast %48 : vector<64xf32> to vector<1x64xf32>
    %c0_28 = arith.constant 0 : index
    %c64_29 = arith.constant 64 : index
    %50 = vector.load %arg6[%c0_28, %c64_29] : memref<1x128xf32, #tpu.memory_space<vmem>>, vector<1x64xf32>
    tpu.vector_store %arg6[%c0_28, %c64_29], %49 {strides = array<i32>} : memref<1x128xf32, #tpu.memory_space<vmem>>, vector<1x64xf32>,
    return
  }
  func.func @transform_2(%arg0: i32, %arg1: i32, %arg2: memref<128xi32, #tpu.memory_space<smem>>, %arg3: memref<128xi32, #tpu.memory_space<smem>>) -> (i32, i32) {
    %c1_i32 = arith.constant 1 : i32
    %0 = arith.muli %arg0, %c1_i32 : i32
    %1 = arith.addi %0, %arg1 : i32
    %c0_i32 = arith.constant 0 : i32
    %c0_i32_0 = arith.constant 0 : i32
    return %c0_i32, %1 : i32, i32
  }
}

</mosaic_0001>

<llo_original>
// kernel: tpu_custom_call.1
$region0: #{tpu_custom_call.1}
  #allocation0 [shape = 'u32[]', space=smem, size = 0x4, offset = 0x4, fixed_abs, tag = 'smem constant byte address 0x4 - core index']
  #allocation1 [shape = 'u32[72,128]{1,0:T(1,128)}', space=vmem, size = 0x9000, scoped, tag = 'internal scratch']
  #allocation2 [shape = 'f32[2,128,128]{2,1,0:T(8,128)}', space=vmem, size = 0x20000, scoped, tag = 'scratch operand']
  #allocation3 [shape = 'f32[2,128,128]{2,1,0:T(8,128)}', space=vmem, size = 0x20000, scoped, tag = 'scratch operand']
  #allocation4 [shape = 's32[4]{0}', space=sflag, size = 0x10, scoped, tag = 'scratch operand']
  #allocation5 [shape = 's32[1]{0}', space=sflag, size = 0x4, scoped, tag = 'scoped memory for tpu_custom_call.1']
  #allocation6 [shape = 'u8[512]{0}', space=smem, size = 0x200, scoped, tag = 'prefetched SMEM operand 0']
  #allocation7 [shape = 'u8[512]{0}', space=smem, size = 0x200, scoped, tag = 'prefetched SMEM operand 1']
  #allocation10 [shape = 's32[]', space=sflag, size = 0x4, offset = 0, fixed_abs, tag = 'sflag constant byte address 0x0 - dummy sync flag']
  #allocation11 [shape = 's32[]', space=sflag, size = 0x4, offset = 0, fixed_abs, tag = 'sflag constant byte address 0x0 - dummy sync flag']
  #allocation12 [shape = 'u32[]', space=smem, size = 0x4, offset = 0x44, fixed_abs, tag = 'smem constant byte address 0x44 - assertion arg 0']
  #allocation13 [shape = 'u32[]', space=smem, size = 0x4, offset = 0x48, fixed_abs, tag = 'smem constant byte address 0x48 - assertion arg 1']
  #allocation14 [shape = 's32[]', space=sflag, size = 0x4, offset = 0, fixed_abs, tag = 'sflag constant byte address 0x0 - dummy sync flag']
  #allocation15 [shape = 's32[]', space=sflag, size = 0x4, offset = 0, fixed_abs, tag = 'sflag constant byte address 0x0 - dummy sync flag']
  #allocation16 [shape = 's32[]', space=sflag, size = 0x4, offset = 0, fixed_abs, tag = 'sflag constant byte address 0x0 - dummy sync flag']
  #allocation17 [shape = 's32[]', space=sflag, size = 0x4, offset = 0, fixed_abs, tag = 'sflag constant byte address 0x0 - dummy sync flag']
  #allocation18 [shape = 's32[]', space=sflag, size = 0x4, offset = 0, fixed_abs, tag = 'sflag constant byte address 0x0 - dummy sync flag']
  #allocation19 [shape = 's32[]', space=sflag, size = 0x4, offset = 0, fixed_abs, tag = 'sflag constant byte address 0x0 - dummy sync flag']
  #allocation20 [shape = 's32[]', space=sflag, size = 0x4, offset = 0, fixed_abs, tag = 'sflag constant byte address 0x0 - dummy sync flag']
  #allocation21 [shape = 's32[]', space=sflag, size = 0x4, offset = 0, fixed_abs, tag = 'sflag constant byte address 0x0 - dummy sync flag']
  #allocation22 [shape = 's32[]', space=sflag, size = 0x4, offset = 0, fixed_abs, tag = 'sflag constant byte address 0x0 - dummy sync flag']
  #allocation23 [shape = 's32[]', space=sflag, size = 0x4, offset = 0, fixed_abs, tag = 'sflag constant byte address 0x0 - dummy sync flag']
  #allocation24 [shape = 's32[]', space=sflag, size = 0x4, offset = 0, fixed_abs, tag = 'sflag constant byte address 0x0 - dummy sync flag']
  #allocation25 [shape = 's32[]', space=sflag, size = 0x4, offset = 0, fixed_abs, tag = 'sflag constant byte address 0x0 - dummy sync flag']
  #allocation26 [shape = 's32[]', space=sflag, size = 0x4, offset = 0, fixed_abs, tag = 'sflag constant byte address 0x0 - dummy sync flag']
  #allocation27 [shape = 's32[]', space=sflag, size = 0x4, offset = 0, fixed_abs, tag = 'sflag constant byte address 0x0 - dummy sync flag']
  #allocation28 [shape = 's32[]', space=sflag, size = 0x4, offset = 0, fixed_abs, tag = 'sflag constant byte address 0x0 - dummy sync flag']
  #allocation29 [shape = 's32[]', space=sflag, size = 0x4, offset = 0, fixed_abs, tag = 'sflag constant byte address 0x0 - dummy sync flag']
  #allocation30 [shape = 's32[]', space=sflag, size = 0x4, offset = 0, fixed_abs, tag = 'sflag constant byte address 0x0 - dummy sync flag']
  #allocation31 [shape = 's32[]', space=sflag, size = 0x4, offset = 0, fixed_abs, tag = 'sflag constant byte address 0x0 - dummy sync flag']
  #allocation32 [shape = 's32[]', space=sflag, size = 0x4, offset = 0, fixed_abs, tag = 'sflag constant byte address 0x0 - dummy sync flag']
  #allocation33 [shape = 's32[]', space=sflag, size = 0x4, offset = 0, fixed_abs, tag = 'sflag constant byte address 0x0 - dummy sync flag']
  #allocation34 [shape = 's32[]', space=sflag, size = 0x4, offset = 0, fixed_abs, tag = 'sflag constant byte address 0x0 - dummy sync flag']
  #allocation35 [shape = 's32[]', space=sflag, size = 0x4, offset = 0, fixed_abs, tag = 'sflag constant byte address 0x0 - dummy sync flag']
  #allocation36 [shape = 's32[]', space=sflag, size = 0x4, offset = 0, fixed_abs, tag = 'sflag constant byte address 0x0 - dummy sync flag']
  #allocation37 [shape = 's32[]', space=sflag, size = 0x4, offset = 0, fixed_abs, tag = 'sflag constant byte address 0x0 - dummy sync flag']
  #allocation38 [shape = 's32[]', space=sflag, size = 0x4, offset = 0, fixed_abs, tag = 'sflag constant byte address 0x0 - dummy sync flag']
  #allocation39 [shape = 's32[]', space=sflag, size = 0x4, offset = 0, fixed_abs, tag = 'sflag constant byte address 0x0 - dummy sync flag']
  #allocation40 [shape = 's32[]', space=sflag, size = 0x4, offset = 0, fixed_abs, tag = 'sflag constant byte address 0x0 - dummy sync flag']
  #allocation41 [shape = 's32[]', space=sflag, size = 0x4, offset = 0, fixed_abs, tag = 'sflag constant byte address 0x0 - dummy sync flag']
  #allocation42 [shape = 's32[]', space=sflag, size = 0x4, offset = 0, fixed_abs, tag = 'sflag constant byte address 0x0 - dummy sync flag']
  #allocation43 [shape = 's32[]', space=sflag, size = 0x4, offset = 0, fixed_abs, tag = 'sflag constant byte address 0x0 - dummy sync flag']
  #allocation44 [shape = 's32[]', space=sflag, size = 0x4, offset = 0, fixed_abs, tag = 'sflag constant byte address 0x0 - dummy sync flag']
  #allocation45 [shape = 's32[]', space=sflag, size = 0x4, offset = 0, fixed_abs, tag = 'sflag constant byte address 0x0 - dummy sync flag']
  #allocation46 [shape = 's32[]', space=sflag, size = 0x4, offset = 0, fixed_abs, tag = 'sflag constant byte address 0x0 - dummy sync flag']
  #allocation47 [shape = 's32[]', space=sflag, size = 0x4, offset = 0, fixed_abs, tag = 'sflag constant byte address 0x0 - dummy sync flag']
  #allocation48 [shape = 's32[]', space=sflag, size = 0x4, offset = 0, fixed_abs, tag = 'sflag constant byte address 0x0 - dummy sync flag']
  #allocation49 [shape = 's32[]', space=sflag, size = 0x4, offset = 0, fixed_abs, tag = 'sflag constant byte address 0x0 - dummy sync flag']
  #allocation50 [shape = 's32[]', space=sflag, size = 0x4, offset = 0, fixed_abs, tag = 'sflag constant byte address 0x0 - dummy sync flag']
  #allocation51 [shape = 's32[]', space=sflag, size = 0x4, offset = 0, fixed_abs, tag = 'sflag constant byte address 0x0 - dummy sync flag']
  #allocation52 [shape = 's32[]', space=sflag, size = 0x4, offset = 0, fixed_abs, tag = 'sflag constant byte address 0x0 - dummy sync flag']
  #allocation53 [shape = 's32[]', space=sflag, size = 0x4, offset = 0, fixed_abs, tag = 'sflag constant byte address 0x0 - dummy sync flag']
  #allocation54 [shape = 's32[]', space=sflag, size = 0x4, offset = 0, fixed_abs, tag = 'sflag constant byte address 0x0 - dummy sync flag']
  #allocation55 [shape = 's32[]', space=sflag, size = 0x4, offset = 0, fixed_abs, tag = 'sflag constant byte address 0x0 - dummy sync flag']
  #allocation56 [shape = 's32[]', space=sflag, size = 0x4, offset = 0, fixed_abs, tag = 'sflag constant byte address 0x0 - dummy sync flag']
  #allocation57 [shape = 's32[]', space=sflag, size = 0x4, offset = 0, fixed_abs, tag = 'sflag constant byte address 0x0 - dummy sync flag']
  #allocation58 [shape = 's32[]', space=sflag, size = 0x4, offset = 0, fixed_abs, tag = 'sflag constant byte address 0x0 - dummy sync flag']
  #allocation59 [shape = 's32[]', space=sflag, size = 0x4, offset = 0, fixed_abs, tag = 'sflag constant byte address 0x0 - dummy sync flag']
  #allocation60 [shape = 's32[]', space=sflag, size = 0x4, offset = 0, fixed_abs, tag = 'sflag constant byte address 0x0 - dummy sync flag']
  #allocation61 [shape = 's32[]', space=sflag, size = 0x4, offset = 0, fixed_abs, tag = 'sflag constant byte address 0x0 - dummy sync flag']
  #allocation62 [shape = 's32[]', space=sflag, size = 0x4, offset = 0, fixed_abs, tag = 'sflag constant byte address 0x0 - dummy sync flag']
  #allocation63 [shape = 's32[]', space=sflag, size = 0x4, offset = 0, fixed_abs, tag = 'sflag constant byte address 0x0 - dummy sync flag']
  #allocation64 [shape = 's32[]', space=sflag, size = 0x4, offset = 0, fixed_abs, tag = 'sflag constant byte address 0x0 - dummy sync flag']
  #allocation65 [shape = 's32[]', space=sflag, size = 0x4, offset = 0, fixed_abs, tag = 'sflag constant byte address 0x0 - dummy sync flag']
  #allocation66 [shape = 's32[]', space=sflag, size = 0x4, offset = 0, fixed_abs, tag = 'sflag constant byte address 0x0 - dummy sync flag']
  #allocation67 [shape = 's32[]', space=sflag, size = 0x4, offset = 0, fixed_abs, tag = 'sflag constant byte address 0x0 - dummy sync flag']
  #allocation68 [shape = 's32[]', space=sflag, size = 0x4, offset = 0, fixed_abs, tag = 'sflag constant byte address 0x0 - dummy sync flag']
  #allocation69 [shape = 's32[]', space=sflag, size = 0x4, offset = 0, fixed_abs, tag = 'sflag constant byte address 0x0 - dummy sync flag']
  #allocation70 [shape = 's32[]', space=sflag, size = 0x4, offset = 0, fixed_abs, tag = 'sflag constant byte address 0x0 - dummy sync flag']
  #allocation71 [shape = 's32[]', space=sflag, size = 0x4, offset = 0, fixed_abs, tag = 'sflag constant byte address 0x0 - dummy sync flag']
  #allocation72 [shape = 's32[]', space=sflag, size = 0x4, offset = 0, fixed_abs, tag = 'sflag constant byte address 0x0 - dummy sync flag']
  #allocation73 [shape = 's32[]', space=sflag, size = 0x4, offset = 0, fixed_abs, tag = 'sflag constant byte address 0x0 - dummy sync flag']
  #allocation74 [shape = 's32[]', space=sflag, size = 0x4, offset = 0, fixed_abs, tag = 'sflag constant byte address 0x0 - dummy sync flag']
  #allocation75 [shape = 's32[]', space=sflag, size = 0x4, offset = 0, fixed_abs, tag = 'sflag constant byte address 0x0 - dummy sync flag']
  %s0 = inlined_call_operand.hbm [shape: s32[128], index: 0, kind: input, shape index: {}]
  %s1 = inlined_call_operand.hbm [shape: s32[128], index: 1, kind: input, shape index: {}]
  %s2 = inlined_call_operand.hbm [shape: f32[32,128], index: 2, kind: input, shape index: {}]
  %s3 = inlined_call_operand.hbm [shape: f32[48,128], index: 3, kind: input, shape index: {}]
  %s4 = inlined_call_operand.hbm [shape: f32[1,128], index: 4, kind: output, shape index: {}]
  %s5 = sld [smem:[#allocation0]]
  $region160: #{tpu_custom_call.1} parent=0
    _
  %s7 = ssub.s32 1, %s5
  %s8 = scalar_select 0, %s7, %s5
  %s10 = sshll.u32 %s0, 4
  %s11 = int_to_ptr.hbm [resolvable:$true] %s10
  %13 = dma.hbm_to_smem %s11, 16, [#allocation6], [#allocation5]
  %s15 = sshll.u32 %s1, 4
  %s16 = int_to_ptr.hbm [resolvable:$true] %s15
  %18 = dma.hbm_to_smem %s16, 16, [#allocation7], [#allocation5]
  %20 = dma.done [#allocation5], 32
  %21 = sfence
  $region1: #{tpu_custom_call.1} parent=0
    #allocation8 [shape = 'u8[512]{0}', space=vmem, size = 0x400, scoped, tag = 'output window, operand 0, single buffered']
    #allocation9 [shape = 's32[1]{0}', space=sflag, size = 0x4, scoped, tag = 'scoped memory for tpu_custom_call.1']
    %22 = vsyncpa [#allocation9], 0
    %s23 = sadd.s32 0, 0
    %s24 = sadd.s32 0, 0
    %s25 = ssub.s32 0, 0
    %s26 = ssub.s32 0, 0
    %p27 = scmp.ne.s32.totalorder 0, 0
    %p28 = scmp.lt.s32.totalorder 0, 0
    %p29 = pnand %p28, %p27
    %p30 = pneg %p29
    %s31 = sadd.s32 0, 2
    %s32 = scalar_select %p30, %s31, 0
    %p33 = scmp.eq.s32.totalorder 0, 0
    // Predicated region
    $region2: #{tpu_custom_call.1} parent=1 // pred_check
      %p34 = pneg %p33
    $region3: #{tpu_custom_call.1} parent=1 // pred_check_branch
      %36 = sbr.rel (%p34) target = $region5
    $region4: #{tpu_custom_call.1} parent=1 // pred_region
      %s37 = smul.u32 %s24, 128
      loop: start=0, step=1, limit=16
      $region6: #{tpu_custom_call.1} parent=4 // loop_pre_header
        _
      $region7: #{tpu_custom_call.1} parent=4 // loop_header
        %s39 = sphi 0, %s43
        %p40 = scmp.ge.s32.totalorder %s39, 16
      $region8: #{tpu_custom_call.1} parent=4 // loop_header_branch
        %42 = sbr.rel (%p40) target = $region12
      $region9: #{tpu_custom_call.1} parent=4 // loop_body
        %s44 = smul.u32 %s39, 8
        %s45 = sadd.s32 %s37, %s44
        %s46 = sld [smem:[#allocation6 + %s45]]
        %s47 = sld [smem:[#allocation7 + %s45]]
        %s48 = scalar_lea.hbm %s2, %s46
        %s49 = scalar_lea.vmem [#allocation2], %s44
        // Predicated region
        $region13: #{tpu_custom_call.1} parent=9 // pred_check
          _
        $region14: #{tpu_custom_call.1} parent=9 // pred_check_branch
          %51 = sbr.rel target = $region16
        $region15: #{tpu_custom_call.1} parent=9 // pred_region
          %52 = sst [smem:[#allocation12]] [#allocation11]
          %53 = sst [smem:[#allocation13]] [#allocation10]
        $region16: #{tpu_custom_call.1} parent=9 // pred_fallthru
          _
        %55 = shalt.err (0)
        %s57 = sshll.u32 %s48, 4
        %s58 = int_to_ptr.hbm [resolvable:$true] %s57
        %s59 = sshll.u32 %s49, 4
        %s60 = int_to_ptr.vmem [resolvable:$true] %s59
        %62 = dma.hbm_to_vmem [thread:$0]  %s58, 16, %s60, [#allocation4]
        %s63 = scalar_lea.hbm %s3, %s47
        %s64 = scalar_lea.vmem [#allocation3], %s44
        %s65 = scalar_lea.sflag [#allocation4], 2
        // Predicated region
        $region17: #{tpu_custom_call.1} parent=9 // pred_check
          _
        $region18: #{tpu_custom_call.1} parent=9 // pred_check_branch
          %67 = sbr.rel target = $region20
        $region19: #{tpu_custom_call.1} parent=9 // pred_region
          %68 = sst [smem:[#allocation12]] [#allocation15]
          %69 = sst [smem:[#allocation13]] [#allocation14]
        $region20: #{tpu_custom_call.1} parent=9 // pred_fallthru
          _
        %71 = shalt.err (0)
        %s73 = sshll.u32 %s63, 4
        %s74 = int_to_ptr.hbm [resolvable:$true] %s73
        %s75 = sshll.u32 %s64, 4
        %s76 = int_to_ptr.vmem [resolvable:$true] %s75
        %78 = dma.hbm_to_vmem [thread:$0]  %s74, 16, %s76, %s65
        %s79 = sadd.s32 %s44, 1
        %s80 = sadd.s32 %s37, %s79
        %s81 = sld [smem:[#allocation6 + %s80]]
        %s82 = sld [smem:[#allocation7 + %s80]]
        %s83 = scalar_lea.hbm %s2, %s81
        %s84 = scalar_lea.vmem [#allocation2], %s79
        // Predicated region
        $region21: #{tpu_custom_call.1} parent=9 // pred_check
          _
        $region22: #{tpu_custom_call.1} parent=9 // pred_check_branch
          %86 = sbr.rel target = $region24
        $region23: #{tpu_custom_call.1} parent=9 // pred_region
          %87 = sst [smem:[#allocation12]] [#allocation17]
          %88 = sst [smem:[#allocation13]] [#allocation16]
        $region24: #{tpu_custom_call.1} parent=9 // pred_fallthru
          _
        %90 = shalt.err (0)
        %s92 = sshll.u32 %s83, 4
        %s93 = int_to_ptr.hbm [resolvable:$true] %s92
        %s94 = sshll.u32 %s84, 4
        %s95 = int_to_ptr.vmem [resolvable:$true] %s94
        %97 = dma.hbm_to_vmem [thread:$0]  %s93, 16, %s95, [#allocation4]
        %s98 = scalar_lea.hbm %s3, %s82
        %s99 = scalar_lea.vmem [#allocation3], %s79
        // Predicated region
        $region25: #{tpu_custom_call.1} parent=9 // pred_check
          _
        $region26: #{tpu_custom_call.1} parent=9 // pred_check_branch
          %101 = sbr.rel target = $region28
        $region27: #{tpu_custom_call.1} parent=9 // pred_region
          %102 = sst [smem:[#allocation12]] [#allocation19]
          %103 = sst [smem:[#allocation13]] [#allocation18]
        $region28: #{tpu_custom_call.1} parent=9 // pred_fallthru
          _
        %105 = shalt.err (0)
        %s107 = sshll.u32 %s98, 4
        %s108 = int_to_ptr.hbm [resolvable:$true] %s107
        %s109 = sshll.u32 %s99, 4
        %s110 = int_to_ptr.vmem [resolvable:$true] %s109
        %112 = dma.hbm_to_vmem [thread:$0]  %s108, 16, %s110, %s65
        %s113 = sadd.s32 %s44, 2
        %s114 = sadd.s32 %s37, %s113
        %s115 = sld [smem:[#allocation6 + %s114]]
        %s116 = sld [smem:[#allocation7 + %s114]]
        %s117 = scalar_lea.hbm %s2, %s115
        %s118 = scalar_lea.vmem [#allocation2], %s113
        // Predicated region
        $region29: #{tpu_custom_call.1} parent=9 // pred_check
          _
        $region30: #{tpu_custom_call.1} parent=9 // pred_check_branch
          %120 = sbr.rel target = $region32
        $region31: #{tpu_custom_call.1} parent=9 // pred_region
          %121 = sst [smem:[#allocation12]] [#allocation21]
          %122 = sst [smem:[#allocation13]] [#allocation20]
        $region32: #{tpu_custom_call.1} parent=9 // pred_fallthru
          _
        %124 = shalt.err (0)
        %s126 = sshll.u32 %s117, 4
        %s127 = int_to_ptr.hbm [resolvable:$true] %s126
        %s128 = sshll.u32 %s118, 4
        %s129 = int_to_ptr.vmem [resolvable:$true] %s128
        %131 = dma.hbm_to_vmem [thread:$0]  %s127, 16, %s129, [#allocation4]
        %s132 = scalar_lea.hbm %s3, %s116
        %s133 = scalar_lea.vmem [#allocation3], %s113
        // Predicated region
        $region33: #{tpu_custom_call.1} parent=9 // pred_check
          _
        $region34: #{tpu_custom_call.1} parent=9 // pred_check_branch
          %135 = sbr.rel target = $region36
        $region35: #{tpu_custom_call.1} parent=9 // pred_region
          %136 = sst [smem:[#allocation12]] [#allocation23]
          %137 = sst [smem:[#allocation13]] [#allocation22]
        $region36: #{tpu_custom_call.1} parent=9 // pred_fallthru
          _
        %139 = shalt.err (0)
        %s141 = sshll.u32 %s132, 4
        %s142 = int_to_ptr.hbm [resolvable:$true] %s141
        %s143 = sshll.u32 %s133, 4
        %s144 = int_to_ptr.vmem [resolvable:$true] %s143
        %146 = dma.hbm_to_vmem [thread:$0]  %s142, 16, %s144, %s65
        %s147 = sadd.s32 %s44, 3
        %s148 = sadd.s32 %s37, %s147
        %s149 = sld [smem:[#allocation6 + %s148]]
        %s150 = sld [smem:[#allocation7 + %s148]]
        %s151 = scalar_lea.hbm %s2, %s149
        %s152 = scalar_lea.vmem [#allocation2], %s147
        // Predicated region
        $region37: #{tpu_custom_call.1} parent=9 // pred_check
          _
        $region38: #{tpu_custom_call.1} parent=9 // pred_check_branch
          %154 = sbr.rel target = $region40
        $region39: #{tpu_custom_call.1} parent=9 // pred_region
          %155 = sst [smem:[#allocation12]] [#allocation25]
          %156 = sst [smem:[#allocation13]] [#allocation24]
        $region40: #{tpu_custom_call.1} parent=9 // pred_fallthru
          _
        %158 = shalt.err (0)
        %s160 = sshll.u32 %s151, 4
        %s161 = int_to_ptr.hbm [resolvable:$true] %s160
        %s162 = sshll.u32 %s152, 4
        %s163 = int_to_ptr.vmem [resolvable:$true] %s162
        %165 = dma.hbm_to_vmem [thread:$0]  %s161, 16, %s163, [#allocation4]
        %s166 = scalar_lea.hbm %s3, %s150
        %s167 = scalar_lea.vmem [#allocation3], %s147
        // Predicated region
        $region41: #{tpu_custom_call.1} parent=9 // pred_check
          _
        $region42: #{tpu_custom_call.1} parent=9 // pred_check_branch
          %169 = sbr.rel target = $region44
        $region43: #{tpu_custom_call.1} parent=9 // pred_region
          %170 = sst [smem:[#allocation12]] [#allocation27]
          %171 = sst [smem:[#allocation13]] [#allocation26]
        $region44: #{tpu_custom_call.1} parent=9 // pred_fallthru
          _
        %173 = shalt.err (0)
        %s175 = sshll.u32 %s166, 4
        %s176 = int_to_ptr.hbm [resolvable:$true] %s175
        %s177 = sshll.u32 %s167, 4
        %s178 = int_to_ptr.vmem [resolvable:$true] %s177
        %180 = dma.hbm_to_vmem [thread:$0]  %s176, 16, %s178, %s65
        %s181 = sadd.s32 %s44, 4
        %s182 = sadd.s32 %s37, %s181
        %s183 = sld [smem:[#allocation6 + %s182]]
        %s184 = sld [smem:[#allocation7 + %s182]]
        %s185 = scalar_lea.hbm %s2, %s183
        %s186 = scalar_lea.vmem [#allocation2], %s181
        // Predicated region
        $region45: #{tpu_custom_call.1} parent=9 // pred_check
          _
        $region46: #{tpu_custom_call.1} parent=9 // pred_check_branch
          %188 = sbr.rel target = $region48
        $region47: #{tpu_custom_call.1} parent=9 // pred_region
          %189 = sst [smem:[#allocation12]] [#allocation29]
          %190 = sst [smem:[#allocation13]] [#allocation28]
        $region48: #{tpu_custom_call.1} parent=9 // pred_fallthru
          _
        %192 = shalt.err (0)
        %s194 = sshll.u32 %s185, 4
        %s195 = int_to_ptr.hbm [resolvable:$true] %s194
        %s196 = sshll.u32 %s186, 4
        %s197 = int_to_ptr.vmem [resolvable:$true] %s196
        %199 = dma.hbm_to_vmem [thread:$0]  %s195, 16, %s197, [#allocation4]
        %s200 = scalar_lea.hbm %s3, %s184
        %s201 = scalar_lea.vmem [#allocation3], %s181
        // Predicated region
        $region49: #{tpu_custom_call.1} parent=9 // pred_check
          _
        $region50: #{tpu_custom_call.1} parent=9 // pred_check_branch
          %203 = sbr.rel target = $region52
        $region51: #{tpu_custom_call.1} parent=9 // pred_region
          %204 = sst [smem:[#allocation12]] [#allocation31]
          %205 = sst [smem:[#allocation13]] [#allocation30]
        $region52: #{tpu_custom_call.1} parent=9 // pred_fallthru
          _
        %207 = shalt.err (0)
        %s209 = sshll.u32 %s200, 4
        %s210 = int_to_ptr.hbm [resolvable:$true] %s209
        %s211 = sshll.u32 %s201, 4
        %s212 = int_to_ptr.vmem [resolvable:$true] %s211
        %214 = dma.hbm_to_vmem [thread:$0]  %s210, 16, %s212, %s65
        %s215 = sadd.s32 %s44, 5
        %s216 = sadd.s32 %s37, %s215
        %s217 = sld [smem:[#allocation6 + %s216]]
        %s218 = sld [smem:[#allocation7 + %s216]]
        %s219 = scalar_lea.hbm %s2, %s217
        %s220 = scalar_lea.vmem [#allocation2], %s215
        // Predicated region
        $region53: #{tpu_custom_call.1} parent=9 // pred_check
          _
        $region54: #{tpu_custom_call.1} parent=9 // pred_check_branch
          %222 = sbr.rel target = $region56
        $region55: #{tpu_custom_call.1} parent=9 // pred_region
          %223 = sst [smem:[#allocation12]] [#allocation33]
          %224 = sst [smem:[#allocation13]] [#allocation32]
        $region56: #{tpu_custom_call.1} parent=9 // pred_fallthru
          _
        %226 = shalt.err (0)
        %s228 = sshll.u32 %s219, 4
        %s229 = int_to_ptr.hbm [resolvable:$true] %s228
        %s230 = sshll.u32 %s220, 4
        %s231 = int_to_ptr.vmem [resolvable:$true] %s230
        %233 = dma.hbm_to_vmem [thread:$0]  %s229, 16, %s231, [#allocation4]
        %s234 = scalar_lea.hbm %s3, %s218
        %s235 = scalar_lea.vmem [#allocation3], %s215
        // Predicated region
        $region57: #{tpu_custom_call.1} parent=9 // pred_check
          _
        $region58: #{tpu_custom_call.1} parent=9 // pred_check_branch
          %237 = sbr.rel target = $region60
        $region59: #{tpu_custom_call.1} parent=9 // pred_region
          %238 = sst [smem:[#allocation12]] [#allocation35]
          %239 = sst [smem:[#allocation13]] [#allocation34]
        $region60: #{tpu_custom_call.1} parent=9 // pred_fallthru
          _
        %241 = shalt.err (0)
        %s243 = sshll.u32 %s234, 4
        %s244 = int_to_ptr.hbm [resolvable:$true] %s243
        %s245 = sshll.u32 %s235, 4
        %s246 = int_to_ptr.vmem [resolvable:$true] %s245
        %248 = dma.hbm_to_vmem [thread:$0]  %s244, 16, %s246, %s65
        %s249 = sadd.s32 %s44, 6
        %s250 = sadd.s32 %s37, %s249
        %s251 = sld [smem:[#allocation6 + %s250]]
        %s252 = sld [smem:[#allocation7 + %s250]]
        %s253 = scalar_lea.hbm %s2, %s251
        %s254 = scalar_lea.vmem [#allocation2], %s249
        // Predicated region
        $region61: #{tpu_custom_call.1} parent=9 // pred_check
          _
        $region62: #{tpu_custom_call.1} parent=9 // pred_check_branch
          %256 = sbr.rel target = $region64
        $region63: #{tpu_custom_call.1} parent=9 // pred_region
          %257 = sst [smem:[#allocation12]] [#allocation37]
          %258 = sst [smem:[#allocation13]] [#allocation36]
        $region64: #{tpu_custom_call.1} parent=9 // pred_fallthru
          _
        %260 = shalt.err (0)
        %s262 = sshll.u32 %s253, 4
        %s263 = int_to_ptr.hbm [resolvable:$true] %s262
        %s264 = sshll.u32 %s254, 4
        %s265 = int_to_ptr.vmem [resolvable:$true] %s264
        %267 = dma.hbm_to_vmem [thread:$0]  %s263, 16, %s265, [#allocation4]
        %s268 = scalar_lea.hbm %s3, %s252
        %s269 = scalar_lea.vmem [#allocation3], %s249
        // Predicated region
        $region65: #{tpu_custom_call.1} parent=9 // pred_check
          _
        $region66: #{tpu_custom_call.1} parent=9 // pred_check_branch
          %271 = sbr.rel target = $region68
        $region67: #{tpu_custom_call.1} parent=9 // pred_region
          %272 = sst [smem:[#allocation12]] [#allocation39]
          %273 = sst [smem:[#allocation13]] [#allocation38]
        $region68: #{tpu_custom_call.1} parent=9 // pred_fallthru
          _
        %275 = shalt.err (0)
        %s277 = sshll.u32 %s268, 4
        %s278 = int_to_ptr.hbm [resolvable:$true] %s277
        %s279 = sshll.u32 %s269, 4
        %s280 = int_to_ptr.vmem [resolvable:$true] %s279
        %282 = dma.hbm_to_vmem [thread:$0]  %s278, 16, %s280, %s65
        %s283 = sadd.s32 %s44, 7
        %s284 = sadd.s32 %s37, %s283
        %s285 = sld [smem:[#allocation6 + %s284]]
        %s286 = sld [smem:[#allocation7 + %s284]]
        %s287 = scalar_lea.hbm %s2, %s285
        %s288 = scalar_lea.vmem [#allocation2], %s283
        // Predicated region
        $region69: #{tpu_custom_call.1} parent=9 // pred_check
          _
        $region70: #{tpu_custom_call.1} parent=9 // pred_check_branch
          %290 = sbr.rel target = $region72
        $region71: #{tpu_custom_call.1} parent=9 // pred_region
          %291 = sst [smem:[#allocation12]] [#allocation41]
          %292 = sst [smem:[#allocation13]] [#allocation40]
        $region72: #{tpu_custom_call.1} parent=9 // pred_fallthru
          _
        %294 = shalt.err (0)
        %s296 = sshll.u32 %s287, 4
        %s297 = int_to_ptr.hbm [resolvable:$true] %s296
        %s298 = sshll.u32 %s288, 4
        %s299 = int_to_ptr.vmem [resolvable:$true] %s298
        %301 = dma.hbm_to_vmem [thread:$0]  %s297, 16, %s299, [#allocation4]
        %s302 = scalar_lea.hbm %s3, %s286
        %s303 = scalar_lea.vmem [#allocation3], %s283
        // Predicated region
        $region73: #{tpu_custom_call.1} parent=9 // pred_check
          _
        $region74: #{tpu_custom_call.1} parent=9 // pred_check_branch
          %305 = sbr.rel target = $region76
        $region75: #{tpu_custom_call.1} parent=9 // pred_region
          %306 = sst [smem:[#allocation12]] [#allocation43]
          %307 = sst [smem:[#allocation13]] [#allocation42]
        $region76: #{tpu_custom_call.1} parent=9 // pred_fallthru
          _
        %309 = shalt.err (0)
        %s311 = sshll.u32 %s302, 4
        %s312 = int_to_ptr.hbm [resolvable:$true] %s311
        %s313 = sshll.u32 %s303, 4
        %s314 = int_to_ptr.vmem [resolvable:$true] %s313
        %316 = dma.hbm_to_vmem [thread:$0]  %s312, 16, %s314, %s65
      $region10: #{tpu_custom_call.1} parent=4 // loop_footer
        %s43 = sadd.s32 1, %s39
      $region11: #{tpu_custom_call.1} parent=4 // loop_footer_branch
        %38 = sbr.rel target = $region7
      $region12: #{tpu_custom_call.1} parent=4 // loop_exit
        _
    $region5: #{tpu_custom_call.1} parent=1 // pred_fallthru
      _
    %s317 = sadd.s32 0, 1
    %p318 = scmp.lt.s32.totalorder %s317, 1
    // Predicated region
    $region77: #{tpu_custom_call.1} parent=1 // pred_check
      %p319 = pneg %p318
    $region78: #{tpu_custom_call.1} parent=1 // pred_check_branch
      %321 = sbr.rel (%p319) target = $region80
    $region79: #{tpu_custom_call.1} parent=1 // pred_region
      %s322 = sadd.s32 %s24, 1
      %s323 = ssub.s32 1, %s32
      %s324 = smul.u32 %s322, 128
      loop: start=0, step=1, limit=16
      $region81: #{tpu_custom_call.1} parent=79 // loop_pre_header
        _
      $region82: #{tpu_custom_call.1} parent=79 // loop_header
        %s326 = sphi 0, %s330
        %p327 = scmp.ge.s32.totalorder %s326, 16
      $region83: #{tpu_custom_call.1} parent=79 // loop_header_branch
        %329 = sbr.rel (%p327) target = $region87
      $region84: #{tpu_custom_call.1} parent=79 // loop_body
        %s331 = smul.u32 %s326, 8
        %s332 = sadd.s32 %s324, %s331
        %s333 = sld [smem:[#allocation6 + %s332]]
        %s334 = sld [smem:[#allocation7 + %s332]]
        %s335 = scalar_lea.hbm %s2, %s333
        %s336 = smul.u32 %s323, 128
        %s337 = sadd.s32 %s331, %s336
        %s338 = scalar_lea.vmem [#allocation2], %s337
        %s339 = scalar_lea.sflag [#allocation4], %s323
        // Predicated region
        $region88: #{tpu_custom_call.1} parent=84 // pred_check
          _
        $region89: #{tpu_custom_call.1} parent=84 // pred_check_branch
          %341 = sbr.rel target = $region91
        $region90: #{tpu_custom_call.1} parent=84 // pred_region
          %342 = sst [smem:[#allocation12]] [#allocation45]
          %343 = sst [smem:[#allocation13]] [#allocation44]
        $region91: #{tpu_custom_call.1} parent=84 // pred_fallthru
          _
        %345 = shalt.err (0)
        %s347 = sshll.u32 %s335, 4
        %s348 = int_to_ptr.hbm [resolvable:$true] %s347
        %s349 = sshll.u32 %s338, 4
        %s350 = int_to_ptr.vmem [resolvable:$true] %s349
        %352 = dma.hbm_to_vmem [thread:$0]  %s348, 16, %s350, %s339
        %s353 = scalar_lea.hbm %s3, %s334
        %s354 = scalar_lea.vmem [#allocation3], %s337
        %s355 = sadd.s32 %s323, 2
        %s356 = scalar_lea.sflag [#allocation4], %s355
        // Predicated region
        $region92: #{tpu_custom_call.1} parent=84 // pred_check
          _
        $region93: #{tpu_custom_call.1} parent=84 // pred_check_branch
          %358 = sbr.rel target = $region95
        $region94: #{tpu_custom_call.1} parent=84 // pred_region
          %359 = sst [smem:[#allocation12]] [#allocation47]
          %360 = sst [smem:[#allocation13]] [#allocation46]
        $region95: #{tpu_custom_call.1} parent=84 // pred_fallthru
          _
        %362 = shalt.err (0)
        %s364 = sshll.u32 %s353, 4
        %s365 = int_to_ptr.hbm [resolvable:$true] %s364
        %s366 = sshll.u32 %s354, 4
        %s367 = int_to_ptr.vmem [resolvable:$true] %s366
        %369 = dma.hbm_to_vmem [thread:$0]  %s365, 16, %s367, %s356
        %s370 = sadd.s32 %s331, 1
        %s371 = sadd.s32 %s324, %s370
        %s372 = sld [smem:[#allocation6 + %s371]]
        %s373 = sld [smem:[#allocation7 + %s371]]
        %s374 = scalar_lea.hbm %s2, %s372
        %s375 = sadd.s32 %s370, %s336
        %s376 = scalar_lea.vmem [#allocation2], %s375
        // Predicated region
        $region96: #{tpu_custom_call.1} parent=84 // pred_check
          _
        $region97: #{tpu_custom_call.1} parent=84 // pred_check_branch
          %378 = sbr.rel target = $region99
        $region98: #{tpu_custom_call.1} parent=84 // pred_region
          %379 = sst [smem:[#allocation12]] [#allocation49]
          %380 = sst [smem:[#allocation13]] [#allocation48]
        $region99: #{tpu_custom_call.1} parent=84 // pred_fallthru
          _
        %382 = shalt.err (0)
        %s384 = sshll.u32 %s374, 4
        %s385 = int_to_ptr.hbm [resolvable:$true] %s384
        %s386 = sshll.u32 %s376, 4
        %s387 = int_to_ptr.vmem [resolvable:$true] %s386
        %389 = dma.hbm_to_vmem [thread:$0]  %s385, 16, %s387, %s339
        %s390 = scalar_lea.hbm %s3, %s373
        %s391 = scalar_lea.vmem [#allocation3], %s375
        // Predicated region
        $region100: #{tpu_custom_call.1} parent=84 // pred_check
          _
        $region101: #{tpu_custom_call.1} parent=84 // pred_check_branch
          %393 = sbr.rel target = $region103
        $region102: #{tpu_custom_call.1} parent=84 // pred_region
          %394 = sst [smem:[#allocation12]] [#allocation51]
          %395 = sst [smem:[#allocation13]] [#allocation50]
        $region103: #{tpu_custom_call.1} parent=84 // pred_fallthru
          _
        %397 = shalt.err (0)
        %s399 = sshll.u32 %s390, 4
        %s400 = int_to_ptr.hbm [resolvable:$true] %s399
        %s401 = sshll.u32 %s391, 4
        %s402 = int_to_ptr.vmem [resolvable:$true] %s401
        %404 = dma.hbm_to_vmem [thread:$0]  %s400, 16, %s402, %s356
        %s405 = sadd.s32 %s331, 2
        %s406 = sadd.s32 %s324, %s405
        %s407 = sld [smem:[#allocation6 + %s406]]
        %s408 = sld [smem:[#allocation7 + %s406]]
        %s409 = scalar_lea.hbm %s2, %s407
        %s410 = sadd.s32 %s405, %s336
        %s411 = scalar_lea.vmem [#allocation2], %s410
        // Predicated region
        $region104: #{tpu_custom_call.1} parent=84 // pred_check
          _
        $region105: #{tpu_custom_call.1} parent=84 // pred_check_branch
          %413 = sbr.rel target = $region107
        $region106: #{tpu_custom_call.1} parent=84 // pred_region
          %414 = sst [smem:[#allocation12]] [#allocation53]
          %415 = sst [smem:[#allocation13]] [#allocation52]
        $region107: #{tpu_custom_call.1} parent=84 // pred_fallthru
          _
        %417 = shalt.err (0)
        %s419 = sshll.u32 %s409, 4
        %s420 = int_to_ptr.hbm [resolvable:$true] %s419
        %s421 = sshll.u32 %s411, 4
        %s422 = int_to_ptr.vmem [resolvable:$true] %s421
        %424 = dma.hbm_to_vmem [thread:$0]  %s420, 16, %s422, %s339
        %s425 = scalar_lea.hbm %s3, %s408
        %s426 = scalar_lea.vmem [#allocation3], %s410
        // Predicated region
        $region108: #{tpu_custom_call.1} parent=84 // pred_check
          _
        $region109: #{tpu_custom_call.1} parent=84 // pred_check_branch
          %428 = sbr.rel target = $region111
        $region110: #{tpu_custom_call.1} parent=84 // pred_region
          %429 = sst [smem:[#allocation12]] [#allocation55]
          %430 = sst [smem:[#allocation13]] [#allocation54]
        $region111: #{tpu_custom_call.1} parent=84 // pred_fallthru
          _
        %432 = shalt.err (0)
        %s434 = sshll.u32 %s425, 4
        %s435 = int_to_ptr.hbm [resolvable:$true] %s434
        %s436 = sshll.u32 %s426, 4
        %s437 = int_to_ptr.vmem [resolvable:$true] %s436
        %439 = dma.hbm_to_vmem [thread:$0]  %s435, 16, %s437, %s356
        %s440 = sadd.s32 %s331, 3
        %s441 = sadd.s32 %s324, %s440
        %s442 = sld [smem:[#allocation6 + %s441]]
        %s443 = sld [smem:[#allocation7 + %s441]]
        %s444 = scalar_lea.hbm %s2, %s442
        %s445 = sadd.s32 %s440, %s336
        %s446 = scalar_lea.vmem [#allocation2], %s445
        // Predicated region
        $region112: #{tpu_custom_call.1} parent=84 // pred_check
          _
        $region113: #{tpu_custom_call.1} parent=84 // pred_check_branch
          %448 = sbr.rel target = $region115
        $region114: #{tpu_custom_call.1} parent=84 // pred_region
          %449 = sst [smem:[#allocation12]] [#allocation57]
          %450 = sst [smem:[#allocation13]] [#allocation56]
        $region115: #{tpu_custom_call.1} parent=84 // pred_fallthru
          _
        %452 = shalt.err (0)
        %s454 = sshll.u32 %s444, 4
        %s455 = int_to_ptr.hbm [resolvable:$true] %s454
        %s456 = sshll.u32 %s446, 4
        %s457 = int_to_ptr.vmem [resolvable:$true] %s456
        %459 = dma.hbm_to_vmem [thread:$0]  %s455, 16, %s457, %s339
        %s460 = scalar_lea.hbm %s3, %s443
        %s461 = scalar_lea.vmem [#allocation3], %s445
        // Predicated region
        $region116: #{tpu_custom_call.1} parent=84 // pred_check
          _
        $region117: #{tpu_custom_call.1} parent=84 // pred_check_branch
          %463 = sbr.rel target = $region119
        $region118: #{tpu_custom_call.1} parent=84 // pred_region
          %464 = sst [smem:[#allocation12]] [#allocation59]
          %465 = sst [smem:[#allocation13]] [#allocation58]
        $region119: #{tpu_custom_call.1} parent=84 // pred_fallthru
          _
        %467 = shalt.err (0)
        %s469 = sshll.u32 %s460, 4
        %s470 = int_to_ptr.hbm [resolvable:$true] %s469
        %s471 = sshll.u32 %s461, 4
        %s472 = int_to_ptr.vmem [resolvable:$true] %s471
        %474 = dma.hbm_to_vmem [thread:$0]  %s470, 16, %s472, %s356
        %s475 = sadd.s32 %s331, 4
        %s476 = sadd.s32 %s324, %s475
        %s477 = sld [smem:[#allocation6 + %s476]]
        %s478 = sld [smem:[#allocation7 + %s476]]
        %s479 = scalar_lea.hbm %s2, %s477
        %s480 = sadd.s32 %s475, %s336
        %s481 = scalar_lea.vmem [#allocation2], %s480
        // Predicated region
        $region120: #{tpu_custom_call.1} parent=84 // pred_check
          _
        $region121: #{tpu_custom_call.1} parent=84 // pred_check_branch
          %483 = sbr.rel target = $region123
        $region122: #{tpu_custom_call.1} parent=84 // pred_region
          %484 = sst [smem:[#allocation12]] [#allocation61]
          %485 = sst [smem:[#allocation13]] [#allocation60]
        $region123: #{tpu_custom_call.1} parent=84 // pred_fallthru
          _
        %487 = shalt.err (0)
        %s489 = sshll.u32 %s479, 4
        %s490 = int_to_ptr.hbm [resolvable:$true] %s489
        %s491 = sshll.u32 %s481, 4
        %s492 = int_to_ptr.vmem [resolvable:$true] %s491
        %494 = dma.hbm_to_vmem [thread:$0]  %s490, 16, %s492, %s339
        %s495 = scalar_lea.hbm %s3, %s478
        %s496 = scalar_lea.vmem [#allocation3], %s480
        // Predicated region
        $region124: #{tpu_custom_call.1} parent=84 // pred_check
          _
        $region125: #{tpu_custom_call.1} parent=84 // pred_check_branch
          %498 = sbr.rel target = $region127
        $region126: #{tpu_custom_call.1} parent=84 // pred_region
          %499 = sst [smem:[#allocation12]] [#allocation63]
          %500 = sst [smem:[#allocation13]] [#allocation62]
        $region127: #{tpu_custom_call.1} parent=84 // pred_fallthru
          _
        %502 = shalt.err (0)
        %s504 = sshll.u32 %s495, 4
        %s505 = int_to_ptr.hbm [resolvable:$true] %s504
        %s506 = sshll.u32 %s496, 4
        %s507 = int_to_ptr.vmem [resolvable:$true] %s506
        %509 = dma.hbm_to_vmem [thread:$0]  %s505, 16, %s507, %s356
        %s510 = sadd.s32 %s331, 5
        %s511 = sadd.s32 %s324, %s510
        %s512 = sld [smem:[#allocation6 + %s511]]
        %s513 = sld [smem:[#allocation7 + %s511]]
        %s514 = scalar_lea.hbm %s2, %s512
        %s515 = sadd.s32 %s510, %s336
        %s516 = scalar_lea.vmem [#allocation2], %s515
        // Predicated region
        $region128: #{tpu_custom_call.1} parent=84 // pred_check
          _
        $region129: #{tpu_custom_call.1} parent=84 // pred_check_branch
          %518 = sbr.rel target = $region131
        $region130: #{tpu_custom_call.1} parent=84 // pred_region
          %519 = sst [smem:[#allocation12]] [#allocation65]
          %520 = sst [smem:[#allocation13]] [#allocation64]
        $region131: #{tpu_custom_call.1} parent=84 // pred_fallthru
          _
        %522 = shalt.err (0)
        %s524 = sshll.u32 %s514, 4
        %s525 = int_to_ptr.hbm [resolvable:$true] %s524
        %s526 = sshll.u32 %s516, 4
        %s527 = int_to_ptr.vmem [resolvable:$true] %s526
        %529 = dma.hbm_to_vmem [thread:$0]  %s525, 16, %s527, %s339
        %s530 = scalar_lea.hbm %s3, %s513
        %s531 = scalar_lea.vmem [#allocation3], %s515
        // Predicated region
        $region132: #{tpu_custom_call.1} parent=84 // pred_check
          _
        $region133: #{tpu_custom_call.1} parent=84 // pred_check_branch
          %533 = sbr.rel target = $region135
        $region134: #{tpu_custom_call.1} parent=84 // pred_region
          %534 = sst [smem:[#allocation12]] [#allocation67]
          %535 = sst [smem:[#allocation13]] [#allocation66]
        $region135: #{tpu_custom_call.1} parent=84 // pred_fallthru
          _
        %537 = shalt.err (0)
        %s539 = sshll.u32 %s530, 4
        %s540 = int_to_ptr.hbm [resolvable:$true] %s539
        %s541 = sshll.u32 %s531, 4
        %s542 = int_to_ptr.vmem [resolvable:$true] %s541
        %544 = dma.hbm_to_vmem [thread:$0]  %s540, 16, %s542, %s356
        %s545 = sadd.s32 %s331, 6
        %s546 = sadd.s32 %s324, %s545
        %s547 = sld [smem:[#allocation6 + %s546]]
        %s548 = sld [smem:[#allocation7 + %s546]]
        %s549 = scalar_lea.hbm %s2, %s547
        %s550 = sadd.s32 %s545, %s336
        %s551 = scalar_lea.vmem [#allocation2], %s550
        // Predicated region
        $region136: #{tpu_custom_call.1} parent=84 // pred_check
          _
        $region137: #{tpu_custom_call.1} parent=84 // pred_check_branch
          %553 = sbr.rel target = $region139
        $region138: #{tpu_custom_call.1} parent=84 // pred_region
          %554 = sst [smem:[#allocation12]] [#allocation69]
          %555 = sst [smem:[#allocation13]] [#allocation68]
        $region139: #{tpu_custom_call.1} parent=84 // pred_fallthru
          _
        %557 = shalt.err (0)
        %s559 = sshll.u32 %s549, 4
        %s560 = int_to_ptr.hbm [resolvable:$true] %s559
        %s561 = sshll.u32 %s551, 4
        %s562 = int_to_ptr.vmem [resolvable:$true] %s561
        %564 = dma.hbm_to_vmem [thread:$0]  %s560, 16, %s562, %s339
        %s565 = scalar_lea.hbm %s3, %s548
        %s566 = scalar_lea.vmem [#allocation3], %s550
        // Predicated region
        $region140: #{tpu_custom_call.1} parent=84 // pred_check
          _
        $region141: #{tpu_custom_call.1} parent=84 // pred_check_branch
          %568 = sbr.rel target = $region143
        $region142: #{tpu_custom_call.1} parent=84 // pred_region
          %569 = sst [smem:[#allocation12]] [#allocation71]
          %570 = sst [smem:[#allocation13]] [#allocation70]
        $region143: #{tpu_custom_call.1} parent=84 // pred_fallthru
          _
        %572 = shalt.err (0)
        %s574 = sshll.u32 %s565, 4
        %s575 = int_to_ptr.hbm [resolvable:$true] %s574
        %s576 = sshll.u32 %s566, 4
        %s577 = int_to_ptr.vmem [resolvable:$true] %s576
        %579 = dma.hbm_to_vmem [thread:$0]  %s575, 16, %s577, %s356
        %s580 = sadd.s32 %s331, 7
        %s581 = sadd.s32 %s324, %s580
        %s582 = sld [smem:[#allocation6 + %s581]]
        %s583 = sld [smem:[#allocation7 + %s581]]
        %s584 = scalar_lea.hbm %s2, %s582
        %s585 = sadd.s32 %s580, %s336
        %s586 = scalar_lea.vmem [#allocation2], %s585
        // Predicated region
        $region144: #{tpu_custom_call.1} parent=84 // pred_check
          _
        $region145: #{tpu_custom_call.1} parent=84 // pred_check_branch
          %588 = sbr.rel target = $region147
        $region146: #{tpu_custom_call.1} parent=84 // pred_region
          %589 = sst [smem:[#allocation12]] [#allocation73]
          %590 = sst [smem:[#allocation13]] [#allocation72]
        $region147: #{tpu_custom_call.1} parent=84 // pred_fallthru
          _
        %592 = shalt.err (0)
        %s594 = sshll.u32 %s584, 4
        %s595 = int_to_ptr.hbm [resolvable:$true] %s594
        %s596 = sshll.u32 %s586, 4
        %s597 = int_to_ptr.vmem [resolvable:$true] %s596
        %599 = dma.hbm_to_vmem [thread:$0]  %s595, 16, %s597, %s339
        %s600 = scalar_lea.hbm %s3, %s583
        %s601 = scalar_lea.vmem [#allocation3], %s585
        // Predicated region
        $region148: #{tpu_custom_call.1} parent=84 // pred_check
          _
        $region149: #{tpu_custom_call.1} parent=84 // pred_check_branch
          %603 = sbr.rel target = $region151
        $region150: #{tpu_custom_call.1} parent=84 // pred_region
          %604 = sst [smem:[#allocation12]] [#allocation75]
          %605 = sst [smem:[#allocation13]] [#allocation74]
        $region151: #{tpu_custom_call.1} parent=84 // pred_fallthru
          _
        %607 = shalt.err (0)
        %s609 = sshll.u32 %s600, 4
        %s610 = int_to_ptr.hbm [resolvable:$true] %s609
        %s611 = sshll.u32 %s601, 4
        %s612 = int_to_ptr.vmem [resolvable:$true] %s611
        %614 = dma.hbm_to_vmem [thread:$0]  %s610, 16, %s612, %s356
      $region85: #{tpu_custom_call.1} parent=79 // loop_footer
        %s330 = sadd.s32 1, %s326
      $region86: #{tpu_custom_call.1} parent=79 // loop_footer_branch
        %325 = sbr.rel target = $region82
      $region87: #{tpu_custom_call.1} parent=79 // loop_exit
        _
    $region80: #{tpu_custom_call.1} parent=1 // pred_fallthru
      _
    %s615 = smul.u32 %s32, 128
    %s616 = scalar_lea.vmem [#allocation2], %s615
    %s617 = scalar_lea.sflag [#allocation4], %s32
    %s618 = smul.u32 128, 1
    %s619 = sshll.u32 %s618, 4
    %620 = dma.done %s617, %s619
    %s621 = scalar_lea.vmem [#allocation3], %s615
    %s622 = sadd.s32 %s32, 2
    %s623 = scalar_lea.sflag [#allocation4], %s622
    %s624 = sshll.u32 %s618, 4
    %625 = dma.done %s623, %s624
    %v626 = vld [vmem:[%s616] sm:$0xff]
    %v627 = vld [vmem:[%s616 + $0x8] sm:$0xff]
    %v628 = vld [vmem:[%s616 + $0x10] sm:$0xff]
    %v629 = vld [vmem:[%s616 + $0x18] sm:$0xff]
    %v630 = vld [vmem:[%s616 + $0x20] sm:$0xff]
    %v631 = vld [vmem:[%s616 + $0x28] sm:$0xff]
    %v632 = vld [vmem:[%s616 + $0x30] sm:$0xff]
    %v633 = vld [vmem:[%s616 + $0x38] sm:$0xff]
    %v634 = vld [vmem:[%s621] sm:$0xff]
    %v635 = vld [vmem:[%s621 + $0x8] sm:$0xff]
    %v636 = vld [vmem:[%s621 + $0x10] sm:$0xff]
    %v637 = vld [vmem:[%s621 + $0x18] sm:$0xff]
    %v638 = vld [vmem:[%s621 + $0x20] sm:$0xff]
    %v639 = vld [vmem:[%s621 + $0x28] sm:$0xff]
    %v640 = vld [vmem:[%s621 + $0x30] sm:$0xff]
    %v641 = vld [vmem:[%s621 + $0x38] sm:$0xff]
    %v642 = vmul.f32 %v626, %v634
    %v643 = vmul.f32 %v627, %v635
    %v644 = vmul.f32 %v628, %v636
    %v645 = vmul.f32 %v629, %v637
    %v646 = vmul.f32 %v630, %v638
    %v647 = vmul.f32 %v631, %v639
    %v648 = vmul.f32 %v632, %v640
    %v649 = vmul.f32 %v633, %v641
    %650 = vadd.xlane.f32.xlu0 %v642
    %v651 = vpop.xlane.xlu0 %650
    %652 = vadd.xlane.f32.xlu0 %v643
    %v653 = vpop.xlane.xlu0 %652
    %654 = vadd.xlane.f32.xlu0 %v644
    %v655 = vpop.xlane.xlu0 %654
    %656 = vadd.xlane.f32.xlu0 %v645
    %v657 = vpop.xlane.xlu0 %656
    %658 = vadd.xlane.f32.xlu0 %v646
    %v659 = vpop.xlane.xlu0 %658
    %660 = vadd.xlane.f32.xlu0 %v647
    %v661 = vpop.xlane.xlu0 %660
    %662 = vadd.xlane.f32.xlu0 %v648
    %v663 = vpop.xlane.xlu0 %662
    %664 = vadd.xlane.f32.xlu0 %v649
    %v665 = vpop.xlane.xlu0 %664
    %v674 = vlaneseq
    %v675 = vand.u32 %v674, 127
    %v676 = vperm.slane %v651, %v675
    %v677 = vadd.s32 %v675, 4294967288
    %v678 = vperm.slane %v653, %v677
    %vm679 = vcmask 130112
    %v680 = vsel %vm679, %v678, %v676
    %v681 = vadd.s32 %v675, 4294967280
    %v682 = vperm.slane %v655, %v681
    %vm683 = vcmask 195712
    %v684 = vsel %vm683, %v682, %v680
    %v685 = vadd.s32 %v675, 4294967272
    %v686 = vperm.slane %v657, %v685
    %vm687 = vcmask 261312
    %v688 = vsel %vm687, %v686, %v684
    %v689 = vadd.s32 %v675, 4294967264
    %v690 = vperm.slane %v659, %v689
    %vm691 = vcmask 326912
    %v692 = vsel %vm691, %v690, %v688
    %v693 = vadd.s32 %v675, 4294967256
    %v694 = vperm.slane %v661, %v693
    %vm695 = vcmask 392512
    %v696 = vsel %vm695, %v694, %v692
    %v697 = vadd.s32 %v675, 4294967248
    %v698 = vperm.slane %v663, %v697
    %vm699 = vcmask 458112
    %v700 = vsel %vm699, %v698, %v696
    %v701 = vadd.s32 %v675, 4294967240
    %v702 = vperm.slane %v665, %v701
    %vm703 = vcmask 523712
    %v704 = vsel %vm703, %v702, %v700
    %vm706 = vcmask 516096
    %707 = vst.msk [vmem:[#allocation8] sm:$0x1] %vm706, %v704
    %v708 = vld [vmem:[%s616 + $0x40] sm:$0xff]
    %v709 = vld [vmem:[%s616 + $0x48] sm:$0xff]
    %v710 = vld [vmem:[%s616 + $0x50] sm:$0xff]
    %v711 = vld [vmem:[%s616 + $0x58] sm:$0xff]
    %v712 = vld [vmem:[%s616 + $0x60] sm:$0xff]
    %v713 = vld [vmem:[%s616 + $0x68] sm:$0xff]
    %v714 = vld [vmem:[%s616 + $0x70] sm:$0xff]
    %v715 = vld [vmem:[%s616 + $0x78] sm:$0xff]
    %v716 = vld [vmem:[%s621 + $0x40] sm:$0xff]
    %v717 = vld [vmem:[%s621 + $0x48] sm:$0xff]
    %v718 = vld [vmem:[%s621 + $0x50] sm:$0xff]
    %v719 = vld [vmem:[%s621 + $0x58] sm:$0xff]
    %v720 = vld [vmem:[%s621 + $0x60] sm:$0xff]
    %v721 = vld [vmem:[%s621 + $0x68] sm:$0xff]
    %v722 = vld [vmem:[%s621 + $0x70] sm:$0xff]
    %v723 = vld [vmem:[%s621 + $0x78] sm:$0xff]
    %v724 = vmul.f32 %v708, %v716
    %v725 = vmul.f32 %v709, %v717
    %v726 = vmul.f32 %v710, %v718
    %v727 = vmul.f32 %v711, %v719
    %v728 = vmul.f32 %v712, %v720
    %v729 = vmul.f32 %v713, %v721
    %v730 = vmul.f32 %v714, %v722
    %v731 = vmul.f32 %v715, %v723
    %732 = vadd.xlane.f32.xlu0 %v724
    %v733 = vpop.xlane.xlu0 %732
    %734 = vadd.xlane.f32.xlu0 %v725
    %v735 = vpop.xlane.xlu0 %734
    %736 = vadd.xlane.f32.xlu0 %v726
    %v737 = vpop.xlane.xlu0 %736
    %738 = vadd.xlane.f32.xlu0 %v727
    %v739 = vpop.xlane.xlu0 %738
    %740 = vadd.xlane.f32.xlu0 %v728
    %v741 = vpop.xlane.xlu0 %740
    %742 = vadd.xlane.f32.xlu0 %v729
    %v743 = vpop.xlane.xlu0 %742
    %744 = vadd.xlane.f32.xlu0 %v730
    %v745 = vpop.xlane.xlu0 %744
    %746 = vadd.xlane.f32.xlu0 %v731
    %v747 = vpop.xlane.xlu0 %746
    %v756 = vadd.s32 %v675, 4294967232
    %v757 = vperm.slane %v733, %v756
    %v758 = vadd.s32 %v675, 4294967224
    %v759 = vperm.slane %v735, %v758
    %vm760 = vcmask 654912
    %v761 = vsel %vm760, %v759, %v757
    %v762 = vadd.s32 %v675, 4294967216
    %v763 = vperm.slane %v737, %v762
    %vm764 = vcmask 720512
    %v765 = vsel %vm764, %v763, %v761
    %v766 = vadd.s32 %v675, 4294967208
    %v767 = vperm.slane %v739, %v766
    %vm768 = vcmask 786112
    %v769 = vsel %vm768, %v767, %v765
    %v770 = vadd.s32 %v675, 4294967200
    %v771 = vperm.slane %v741, %v770
    %vm772 = vcmask 851712
    %v773 = vsel %vm772, %v771, %v769
    %v774 = vadd.s32 %v675, 4294967192
    %v775 = vperm.slane %v743, %v774
    %vm776 = vcmask 917312
    %v777 = vsel %vm776, %v775, %v773
    %v778 = vadd.s32 %v675, 4294967184
    %v779 = vperm.slane %v745, %v778
    %vm780 = vcmask 982912
    %v781 = vsel %vm780, %v779, %v777
    %v782 = vadd.s32 %v675, 4294967176
    %v783 = vperm.slane %v747, %v782
    %vm784 = vcmask 1048512
    %v785 = vsel %vm784, %v783, %v781
    %vm787 = vcmask 1040896
    %788 = vst.msk [vmem:[#allocation8] sm:$0x1] %vm787, %v785
    // Predicated region
    $region152: #{tpu_custom_call.1} parent=1 // pred_check
      _
    $region153: #{tpu_custom_call.1} parent=1 // pred_check_branch
      %790 = sbr.rel (0) target = $region155
    $region154: #{tpu_custom_call.1} parent=1 // pred_region
      %s791 = sadd.s32 0, 0
      %793 = vsyncadd [#allocation9], 0
      %s794 = scalar_lea.hbm %s4, %s791
      %s796 = sshll.u32 [#allocation8], 4
      %s797 = int_to_ptr.vmem [resolvable:$true] %s796
      %s798 = sshll.u32 %s794, 4
      %s799 = int_to_ptr.hbm [resolvable:$true] %s798
      %801 = dma.vmem_to_hbm [thread:$0]  %s797, 16, %s799, [#allocation9]
    $region155: #{tpu_custom_call.1} parent=1 // pred_fallthru
      _
    // Predicated region
    $region156: #{tpu_custom_call.1} parent=1 // pred_check
      _
    $region157: #{tpu_custom_call.1} parent=1 // pred_check_branch
      %803 = sbr.rel (0) target = $region159
    $region158: #{tpu_custom_call.1} parent=1 // pred_region
      %805 = dma.done [#allocation9], 16
    $region159: #{tpu_custom_call.1} parent=1 // pred_fallthru
      _
    %806 = vsyncpa [#allocation9], 1
  %807 = vsyncmov [#allocation4]
  %s808 = vpop.sfrf %807
  %p809 = scmp.eq.s32.totalorder %s808, 0
  %p810 = pneg %p809
  %812 = shalt.err (%p810)
  %s813 = scalar_lea.sflag [#allocation4], 1
  %814 = vsyncmov %s813
  %s815 = vpop.sfrf %814
  %p816 = scmp.eq.s32.totalorder %s815, 0
  %p817 = pneg %p816
  %819 = shalt.err (%p817)
  %s820 = scalar_lea.sflag [#allocation4], 2
  %821 = vsyncmov %s820
  %s822 = vpop.sfrf %821
  %p823 = scmp.eq.s32.totalorder %s822, 0
  %p824 = pneg %p823
  %826 = shalt.err (%p824)
  %s827 = scalar_lea.sflag [#allocation4], 3
  %828 = vsyncmov %s827
  %s829 = vpop.sfrf %828
  %p830 = scmp.eq.s32.totalorder %s829, 0
  %p831 = pneg %p830
  %833 = shalt.err (%p831)

</llo_original>
